<compile_context>
chip_gen: v7x
topology: tpu7x:2x2x1
jax: 0.10.0
libtpu: 0.0.40
codegen_flags: <defaults>
</compile_context>

<pallas_src>
import jax
import jax.numpy as jnp
from jax import lax
from jax.experimental import pallas as pl
from jax.experimental.pallas import tpu as pltpu

# ----------------------------- model sizes ----------------------------------
HIDDEN = 32        # hidden_size
OUTPUT = 16        # output_size.n_words
VOCAB = 24         # vocab_size.n_words
MEM_SIZE = 104     # memory_size (default)
MEM_DIM = 3        # memory_dim (default)

STACK_W = 128            # lane-padded stack width (>= MEM_SIZE)
HEAD_W = 128             # lane-padded W_y output-head width (>= OUTPUT)
STEP_SUB = 8             # sublane-padded per-step head rows (>= 1 + MEM_DIM)


# ------------------------------- kernel -------------------------------------
def srnn_seq_kernel(x_ref,                          # VMEM (T,H)  W_ih[tok] + b'
                    h0_ref, stack0_ref,             # VMEM (1,H), (MEM_DIM, STACK_W)
                    w_hh_ref,                       # (H,H)
                    w_shhh_ref,                     # (MEM_DIM,H) = W_sh @ W_hh
                    w_stepT_ref, b_stepT_ref,       # (STEP_SUB,H), (STEP_SUB,1)
                    w_out_ref, b_out_ref,           # (H,HEAD_W), (1,HEAD_W)
                    out_ref, hid_ref, stack_out_ref,
                    h_all_ref):                     # scratch VMEM (T,H)
    f32 = jnp.float32
    T = out_ref.shape[0]

    # Weights stay resident in VMEM for the whole sequence; hoist invariant loads
    # and the loop-invariant masks (JAX does not CSE iota/compare per step).
    w_hh = w_hh_ref[...]
    w_shhh = w_shhh_ref[...]
    w_stepT = w_stepT_ref[...]
    b_stepT = b_stepT_ref[...]

    col = lax.broadcasted_iota(jnp.int32, (MEM_DIM, STACK_W), 1)
    col0_mask = col == 0            # injection lane for the pushed element
    pad_mask = col < MEM_SIZE       # keeps the lane padding zero (load-bearing)

    def step(t, carry):
        h_prev, stack = carry                       # (1,H), (MEM_DIM, STACK_W)

        # Pre-gathered token row (biases b_ih + b_hh + b_sh@W_hh already folded in).
        x_row = x_ref[pl.ds(t, 1), :]               # (1, H)

        # top-of-stack contribution through the folded W_sh @ W_hh (runs on VPU
        # in parallel with the h_prev @ W_hh MXU push below).
        top_sh = jnp.zeros((1, HIDDEN), f32)
        for d in range(MEM_DIM):
            top_sh = top_sh + stack[d:d + 1, 0:1] * w_shhh[d:d + 1, :]

        # Single-step Elman RNN (tanh); W_sh already folded into the terms above.
        pre = x_row + jnp.dot(h_prev, w_hh, preferred_element_type=f32) + top_sh
        h = jnp.tanh(pre)                           # (1, H)
        h_all_ref[pl.ds(t, 1), :] = h               # for the batched W_y head

        # Tiny per-step head [a_diff | W_n] in sublane layout:
        #   row 0 -> a0 logit (pre-differenced softmax), rows 1..3 -> new_elt.
        logits = jnp.sum(h * w_stepT, axis=1, keepdims=True) + b_stepT  # (STEP_SUB,1)
        gates = jax.nn.sigmoid(logits)
        a0 = gates[0:1, 0:1]                        # (1,1)  softmax(W_a h)[0]
        new_elt_col = gates[1:1 + MEM_DIM, 0:1]     # (MEM_DIM,1) sigmoid(W_n h)

        # Stack update in lane layout (one vreg, two lane rolls, one where).
        push = pltpu.roll(stack, shift=1, axis=1)             # col i <- col i-1
        push = jnp.where(col0_mask, new_elt_col, push)         # new elt at col 0
        pop = pltpu.roll(stack, shift=STACK_W - 1, axis=1)     # col i <- col i+1
        new_stack = pop + a0 * (push - pop)                    # a0*push + (1-a0)*pop
        new_stack = jnp.where(pad_mask, new_stack, 0.0)        # keep padding zero

        return h, new_stack

    h_fin, stack_fin = lax.fori_loop(0, T, step, (h0_ref[...], stack0_ref[...]),
                                     unroll=min(8, max(T, 1)))
    hid_ref[...] = h_fin
    stack_out_ref[...] = stack_fin

    # Batched W_y head: ONE (T,H)@(H,128) MXU pass + one dense lane-wide store.
    out_ref[...] = jax.nn.sigmoid(
        jnp.dot(h_all_ref[...], w_out_ref[...], preferred_element_type=f32)
        + b_out_ref[...])


# ------------------------------- wrapper -------------------------------------
def _pack_params(params):
    """Fold W_sh through W_hh, pre-difference the action logits, and split the
    heads into a tiny per-step [a_diff | W_n] slab + a post-loop W_y slab."""
    f32 = jnp.float32
    w_hh = params['w_hh'].astype(f32)
    w_shhh = params['w_sh'].astype(f32) @ w_hh                        # (MEM_DIM, H)
    b_pre = (params['b_sh'].astype(f32) @ w_hh
             + params['b_ih'] + params['b_hh'])                       # (1, H)

    # per-step head, transposed (sublane) layout
    w_stepT = jnp.zeros((STEP_SUB, HIDDEN), f32)
    w_stepT = w_stepT.at[0, :].set(params['w_a'][:, 0] - params['w_a'][:, 1])
    w_stepT = w_stepT.at[1:1 + MEM_DIM, :].set(params['w_n'].T)
    b_stepT = jnp.zeros((STEP_SUB, 1), f32)
    b_stepT = b_stepT.at[0, 0].set(params['b_a'][0, 0] - params['b_a'][0, 1])
    b_stepT = b_stepT.at[1:1 + MEM_DIM, 0].set(params['b_n'][0, :])

    # post-loop output head, lane-dense
    w_out = jnp.zeros((HIDDEN, HEAD_W), f32).at[:, 0:OUTPUT].set(params['w_y'])
    b_out = jnp.zeros((1, HEAD_W), f32).at[:, 0:OUTPUT].set(params['b_y'])
    return w_hh, w_shhh, b_pre, w_stepT, b_stepT, w_out, b_out


@jax.jit
def srnn_forward_seq(tokens, hidden0, stack, params):
    """Run the SRNN over a whole token sequence in ONE pallas_call.

    tokens: (T,) int32; hidden0: (1,1,H); stack: (MEM_SIZE, MEM_DIM) f32.
    Returns (outputs (T, OUTPUT), hidden (1,1,H), stack (MEM_SIZE, MEM_DIM));
    step t of `outputs` equals what module.forward would return for token t
    when hidden/stack are threaded through step by step.
    """
    T = tokens.shape[0]
    h0 = hidden0.reshape(1, HIDDEN).astype(jnp.float32)
    stack_lane = jnp.zeros((MEM_DIM, STACK_W), jnp.float32)
    stack_lane = stack_lane.at[:, :MEM_SIZE].set(stack.T)    # lane-dense layout

    w_hh, w_shhh, b_pre, w_stepT, b_stepT, w_out, b_out = _pack_params(params)
    # Pre-gather the one-hot@W_ih rows and fold every recurrence bias in.
    x_all = params['w_ih'].astype(jnp.float32)[tokens.astype(jnp.int32)] + b_pre

    vmem = pl.BlockSpec(memory_space=pltpu.MemorySpace.VMEM)

    outs, hid, stack_fin = pl.pallas_call(
        srnn_seq_kernel,
        out_shape=(
            jax.ShapeDtypeStruct((T, HEAD_W), jnp.float32),
            jax.ShapeDtypeStruct((1, HIDDEN), jnp.float32),
            jax.ShapeDtypeStruct((MEM_DIM, STACK_W), jnp.float32),
        ),
        in_specs=[vmem] * 9,
        out_specs=(vmem, vmem, vmem),
        scratch_shapes=[pltpu.VMEM((T, HIDDEN), jnp.float32)],
    )(x_all, h0, stack_lane, w_hh, w_shhh, w_stepT, b_stepT, w_out, b_out)

    outputs = outs[:, :OUTPUT]
    new_stack = stack_fin[:, :MEM_SIZE].T
    return outputs, hid.reshape(1, 1, HIDDEN), new_stack


def srnn_forward(inp_idx, hidden0, stack, params):
    """Module-signature single-step forward (T = 1)."""
    out, hid, new_stack = srnn_forward_seq(jnp.reshape(inp_idx, (1,)).astype(jnp.int32),
                                           hidden0, stack, params)
    return out.reshape(1, OUTPUT), hid, new_stack


# ----------------------- pure-JAX reference (for check) ----------------------
def srnn_reference_step(inp_idx, h_prev, stack, params):
    x = jax.nn.one_hot(inp_idx, VOCAB, dtype=jnp.float32).reshape(1, VOCAB)
    top = stack[0:1, :]
    hidden_bar = top @ params['w_sh'] + params['b_sh'] + h_prev
    h = jnp.tanh(x @ params['w_ih'] + params['b_ih']
                 + hidden_bar @ params['w_hh'] + params['b_hh'])
    output = jax.nn.sigmoid(h @ params['w_y'] + params['b_y'])
    a = jax.nn.softmax(h @ params['w_a'] + params['b_a'], axis=-1).reshape(-1)
    new_elt = jax.nn.sigmoid(h @ params['w_n'] + params['b_n'])
    push = jnp.concatenate([new_elt, stack[:-1]], axis=0)
    pop = jnp.concatenate([stack[1:], jnp.zeros((1, MEM_DIM), jnp.float32)], axis=0)
    new_stack = a[0] * push + a[1] * pop
    return output, h, new_stack


# --------------------------------- main ---------------------------------------
def make_params(key):
    ks = jax.random.split(key, 12)
    n = lambda k, s: (0.1 * jax.random.normal(k, s)).astype(jnp.float32)
    # weights stored as (in_features, out_features) (i.e. PyTorch weight.T)
    return {
        'w_ih': n(ks[0], (VOCAB, HIDDEN)),   'b_ih': n(ks[1], (1, HIDDEN)),
        'w_hh': n(ks[2], (HIDDEN, HIDDEN)),  'b_hh': n(ks[3], (1, HIDDEN)),
        'w_y':  n(ks[4], (HIDDEN, OUTPUT)),  'b_y':  n(ks[5], (1, OUTPUT)),
        'w_a':  n(ks[6], (HIDDEN, 2)),       'b_a':  n(ks[7], (1, 2)),
        'w_n':  n(ks[8], (HIDDEN, MEM_DIM)), 'b_n':  n(ks[9], (1, MEM_DIM)),
        'w_sh': n(ks[10], (MEM_DIM, HIDDEN)),'b_sh': n(ks[11], (1, HIDDEN)),
    }


if __name__ == "__main__":
    key = jax.random.PRNGKey(0)
    k_par, k_h, k_s, k_tok = jax.random.split(key, 4)

    T = 8
    params = make_params(k_par)
    tokens = jax.random.randint(k_tok, (T,), 0, VOCAB, dtype=jnp.int32)
    hidden0 = (0.1 * jax.random.normal(k_h, (1, 1, HIDDEN))).astype(jnp.float32)
    stack0 = (0.1 * jax.random.normal(k_s, (MEM_SIZE, MEM_DIM))).astype(jnp.float32)

    # one kernel call for the whole sequence
    outs, hid, stack_fin = srnn_forward_seq(tokens, hidden0, stack0, params)
    jax.block_until_ready((outs, hid, stack_fin))

    # step-by-step pure-JAX reference (exactly the PyTorch forward per token)
    h_ref = hidden0.reshape(1, HIDDEN)
    st_ref = stack0
    ref_rows = []
    for t in range(T):
        o, h_ref, st_ref = srnn_reference_step(tokens[t], h_ref, st_ref, params)
        ref_rows.append(o)
    ref_outs = jnp.concatenate(ref_rows, axis=0)

    assert outs.shape == (T, OUTPUT)
    assert hid.shape == (1, 1, HIDDEN)
    assert stack_fin.shape == (MEM_SIZE, MEM_DIM)
    assert jnp.allclose(outs, ref_outs, atol=1e-5, rtol=1e-4)
    assert jnp.allclose(hid.reshape(1, HIDDEN), h_ref, atol=1e-5, rtol=1e-4)
    assert jnp.allclose(stack_fin, st_ref, atol=1e-5, rtol=1e-4)

    # single-step API (matches module.forward signature/shapes)
    o1, h1, s1 = srnn_forward(tokens[0], hidden0, stack0, params)
    jax.block_until_ready((o1, h1, s1))
    r1, rh1, rs1 = srnn_reference_step(tokens[0], hidden0.reshape(1, HIDDEN), stack0, params)
    assert jnp.allclose(o1, r1, atol=1e-5, rtol=1e-4)
    assert jnp.allclose(h1.reshape(1, HIDDEN), rh1, atol=1e-5, rtol=1e-4)
    assert jnp.allclose(s1, rs1, atol=1e-5, rtol=1e-4)

    print("KERNEL_OK")
</pallas_src>

<mosaic_0001>
module attributes {stable_mosaic.version = 11 : i64} {
  func.func @srnn_seq_kernel(%arg0: memref<8x32xf32, #tpu.memory_space<vmem>>, %arg1: memref<1x32xf32, #tpu.memory_space<vmem>>, %arg2: memref<3x128xf32, #tpu.memory_space<vmem>>, %arg3: memref<32x32xf32, #tpu.memory_space<vmem>>, %arg4: memref<3x32xf32, #tpu.memory_space<vmem>>, %arg5: memref<8x32xf32, #tpu.memory_space<vmem>>, %arg6: memref<8x1xf32, #tpu.memory_space<vmem>>, %arg7: memref<32x128xf32, #tpu.memory_space<vmem>>, %arg8: memref<1x128xf32, #tpu.memory_space<vmem>>, %arg9: memref<8x128xf32, #tpu.memory_space<vmem>>, %arg10: memref<1x32xf32, #tpu.memory_space<vmem>>, %arg11: memref<3x128xf32, #tpu.memory_space<vmem>>, %arg12: memref<8x32xf32, #tpu.memory_space<vmem>>) attributes {dimension_semantics = [], scalar_prefetch = 0 : i64, scratch_operands = 1 : i64, tpu.core_type = #tpu.core_type<tc>} {
    %c0 = arith.constant 0 : index
    %c0_0 = arith.constant 0 : index
    %0 = vector.load %arg3[%c0, %c0_0] : memref<32x32xf32, #tpu.memory_space<vmem>>, vector<32x32xf32>
    %c0_1 = arith.constant 0 : index
    %c0_2 = arith.constant 0 : index
    %1 = vector.load %arg4[%c0_1, %c0_2] : memref<3x32xf32, #tpu.memory_space<vmem>>, vector<3x32xf32>
    %c0_3 = arith.constant 0 : index
    %c0_4 = arith.constant 0 : index
    %2 = vector.load %arg5[%c0_3, %c0_4] : memref<8x32xf32, #tpu.memory_space<vmem>>, vector<8x32xf32>
    %c0_5 = arith.constant 0 : index
    %c0_6 = arith.constant 0 : index
    %3 = vector.load %arg6[%c0_5, %c0_6] : memref<8x1xf32, #tpu.memory_space<vmem>>, vector<8x1xf32>
    %4 = tpu.iota {dimensions = array<i32: 1>} : vector<3x128xi32>
    %c0_i32 = arith.constant 0 : i32
    %5 = vector.broadcast %c0_i32 : i32 to vector<3x128xi32>
    %6 = arith.cmpi eq, %4, %5 : vector<3x128xi32>
    %c104_i32 = arith.constant 104 : i32
    %7 = vector.broadcast %c104_i32 : i32 to vector<3x128xi32>
    %8 = arith.cmpi slt, %4, %7 : vector<3x128xi32>
    %c0_7 = arith.constant 0 : index
    %c0_8 = arith.constant 0 : index
    %9 = vector.load %arg1[%c0_7, %c0_8] : memref<1x32xf32, #tpu.memory_space<vmem>>, vector<1x32xf32>
    %c0_9 = arith.constant 0 : index
    %c0_10 = arith.constant 0 : index
    %10 = vector.load %arg2[%c0_9, %c0_10] : memref<3x128xf32, #tpu.memory_space<vmem>>, vector<3x128xf32>
    %c0_i32_11 = arith.constant 0 : i32
    %11 = arith.index_cast %c0_i32_11 : i32 to index
    %c0_12 = arith.constant 0 : index
    %12 = vector.load %arg0[%11, %c0_12] : memref<8x32xf32, #tpu.memory_space<vmem>>, vector<1x32xf32>
    %cst = arith.constant 0.000000e+00 : f32
    %13 = vector.broadcast %cst : f32 to vector<1x32xf32>
    %14 = vector.extract_strided_slice %10 {offsets = [0, 0], sizes = [1, 1], strides = [1, 1]} : vector<3x128xf32> to vector<1x1xf32>
    %15 = vector.extract_strided_slice %1 {offsets = [0, 0], sizes = [1, 32], strides = [1, 1]} : vector<3x32xf32> to vector<1x32xf32>
    %16 = vector.broadcast %14 : vector<1x1xf32> to vector<1x32xf32>
    %17 = arith.mulf %16, %15 : vector<1x32xf32>
    %18 = arith.addf %13, %17 : vector<1x32xf32>
    %19 = vector.extract_strided_slice %10 {offsets = [1, 0], sizes = [1, 1], strides = [1, 1]} : vector<3x128xf32> to vector<1x1xf32>
    %20 = vector.extract_strided_slice %1 {offsets = [1, 0], sizes = [1, 32], strides = [1, 1]} : vector<3x32xf32> to vector<1x32xf32>
    %21 = vector.broadcast %19 : vector<1x1xf32> to vector<1x32xf32>
    %22 = arith.mulf %21, %20 : vector<1x32xf32>
    %23 = arith.addf %18, %22 : vector<1x32xf32>
    %24 = vector.extract_strided_slice %10 {offsets = [2, 0], sizes = [1, 1], strides = [1, 1]} : vector<3x128xf32> to vector<1x1xf32>
    %25 = vector.extract_strided_slice %1 {offsets = [2, 0], sizes = [1, 32], strides = [1, 1]} : vector<3x32xf32> to vector<1x32xf32>
    %26 = vector.broadcast %24 : vector<1x1xf32> to vector<1x32xf32>
    %27 = arith.mulf %26, %25 : vector<1x32xf32>
    %28 = arith.addf %23, %27 : vector<1x32xf32>
    %cst_13 = arith.constant dense<0.000000e+00> : vector<1x32xf32>
    %29 = tpu.matmul %9, %0, %cst_13 {dimension_numbers = #tpu.dot_dimension_numbers<[1], [0], [0], [1], [0, 0, 1, 1], [], []>} : vector<1x32xf32>, vector<32x32xf32>, vector<1x32xf32> -> vector<1x32xf32>
    %30 = arith.addf %12, %29 : vector<1x32xf32>
    %31 = arith.addf %30, %28 : vector<1x32xf32>
    %32 = math.tanh %31 : vector<1x32xf32>
    %33 = arith.index_cast %c0_i32_11 : i32 to index
    %c0_14 = arith.constant 0 : index
    %34 = vector.load %arg12[%33, %c0_14] : memref<8x32xf32, #tpu.memory_space<vmem>>, vector<1x32xf32>
    tpu.vector_store %arg12[%33, %c0_14], %32 {strides = array<i32>} : memref<8x32xf32, #tpu.memory_space<vmem>>, vector<1x32xf32>,
    %35 = vector.broadcast %32 : vector<1x32xf32> to vector<8x32xf32>
    %36 = arith.mulf %35, %2 : vector<8x32xf32>
    %cst_15 = arith.constant dense<0.000000e+00> : vector<8xf32>
    %37 = vector.multi_reduction <add>, %36, %cst_15 [1] : vector<8x32xf32> to vector<8xf32>
    %38 = vector.shape_cast %37 : vector<8xf32> to vector<8x1xf32>
    %39 = arith.addf %38, %3 : vector<8x1xf32>
    %40 = arith.negf %39 : vector<8x1xf32>
    %41 = math.exp %40 : vector<8x1xf32>
    %cst_16 = arith.constant 1.000000e+00 : f32
    %42 = vector.broadcast %cst_16 : f32 to vector<8x1xf32>
    %43 = arith.addf %42, %41 : vector<8x1xf32>
    %44 = arith.divf %42, %43 : vector<8x1xf32>
    %45 = vector.extract_strided_slice %44 {offsets = [0, 0], sizes = [1, 1], strides = [1, 1]} : vector<8x1xf32> to vector<1x1xf32>
    %46 = vector.extract_strided_slice %44 {offsets = [1, 0], sizes = [3, 1], strides = [1, 1]} : vector<8x1xf32> to vector<3x1xf32>
    %c1_i32 = arith.constant 1 : i32
    %47 = tpu.dynamic_rotate %10 by %c1_i32 dim 1 : vector<3x128xf32>, i32 -> vector<3x128xf32>
    %48 = vector.shape_cast %46 : vector<3x1xf32> to vector<3x1xf32>
    %49 = vector.broadcast %48 : vector<3x1xf32> to vector<3x128xf32>
    %50 = arith.select %6, %49, %47 : vector<3x128xi1>, vector<3x128xf32>
    %c127_i32 = arith.constant 127 : i32
    %51 = tpu.dynamic_rotate %10 by %c127_i32 dim 1 : vector<3x128xf32>, i32 -> vector<3x128xf32>
    %52 = arith.subf %50, %51 : vector<3x128xf32>
    %53 = vector.broadcast %45 : vector<1x1xf32> to vector<3x128xf32>
    %54 = arith.mulf %53, %52 : vector<3x128xf32>
    %55 = arith.addf %51, %54 : vector<3x128xf32>
    %cst_17 = arith.constant 0.000000e+00 : f32
    %56 = vector.broadcast %cst_17 : f32 to vector<3x128xf32>
    %57 = arith.select %8, %55, %56 : vector<3x128xi1>, vector<3x128xf32>
    %c1_i32_18 = arith.constant 1 : i32
    %58 = arith.index_cast %c1_i32_18 : i32 to index
    %c0_19 = arith.constant 0 : index
    %59 = vector.load %arg0[%58, %c0_19] : memref<8x32xf32, #tpu.memory_space<vmem>>, vector<1x32xf32>
    %cst_20 = arith.constant 0.000000e+00 : f32
    %60 = vector.broadcast %cst_20 : f32 to vector<1x32xf32>
    %61 = vector.extract_strided_slice %57 {offsets = [0, 0], sizes = [1, 1], strides = [1, 1]} : vector<3x128xf32> to vector<1x1xf32>
    %62 = vector.extract_strided_slice %1 {offsets = [0, 0], sizes = [1, 32], strides = [1, 1]} : vector<3x32xf32> to vector<1x32xf32>
    %63 = vector.broadcast %61 : vector<1x1xf32> to vector<1x32xf32>
    %64 = arith.mulf %63, %62 : vector<1x32xf32>
    %65 = arith.addf %60, %64 : vector<1x32xf32>
    %66 = vector.extract_strided_slice %57 {offsets = [1, 0], sizes = [1, 1], strides = [1, 1]} : vector<3x128xf32> to vector<1x1xf32>
    %67 = vector.extract_strided_slice %1 {offsets = [1, 0], sizes = [1, 32], strides = [1, 1]} : vector<3x32xf32> to vector<1x32xf32>
    %68 = vector.broadcast %66 : vector<1x1xf32> to vector<1x32xf32>
    %69 = arith.mulf %68, %67 : vector<1x32xf32>
    %70 = arith.addf %65, %69 : vector<1x32xf32>
    %71 = vector.extract_strided_slice %57 {offsets = [2, 0], sizes = [1, 1], strides = [1, 1]} : vector<3x128xf32> to vector<1x1xf32>
    %72 = vector.extract_strided_slice %1 {offsets = [2, 0], sizes = [1, 32], strides = [1, 1]} : vector<3x32xf32> to vector<1x32xf32>
    %73 = vector.broadcast %71 : vector<1x1xf32> to vector<1x32xf32>
    %74 = arith.mulf %73, %72 : vector<1x32xf32>
    %75 = arith.addf %70, %74 : vector<1x32xf32>
    %cst_21 = arith.constant dense<0.000000e+00> : vector<1x32xf32>
    %76 = tpu.matmul %32, %0, %cst_21 {dimension_numbers = #tpu.dot_dimension_numbers<[1], [0], [0], [1], [0, 0, 1, 1], [], []>} : vector<1x32xf32>, vector<32x32xf32>, vector<1x32xf32> -> vector<1x32xf32>
    %77 = arith.addf %59, %76 : vector<1x32xf32>
    %78 = arith.addf %77, %75 : vector<1x32xf32>
    %79 = math.tanh %78 : vector<1x32xf32>
    %80 = arith.index_cast %c1_i32_18 : i32 to index
    %c0_22 = arith.constant 0 : index
    %81 = vector.load %arg12[%80, %c0_22] : memref<8x32xf32, #tpu.memory_space<vmem>>, vector<1x32xf32>
    tpu.vector_store %arg12[%80, %c0_22], %79 {strides = array<i32>} : memref<8x32xf32, #tpu.memory_space<vmem>>, vector<1x32xf32>,
    %82 = vector.broadcast %79 : vector<1x32xf32> to vector<8x32xf32>
    %83 = arith.mulf %82, %2 : vector<8x32xf32>
    %cst_23 = arith.constant dense<0.000000e+00> : vector<8xf32>
    %84 = vector.multi_reduction <add>, %83, %cst_23 [1] : vector<8x32xf32> to vector<8xf32>
    %85 = vector.shape_cast %84 : vector<8xf32> to vector<8x1xf32>
    %86 = arith.addf %85, %3 : vector<8x1xf32>
    %87 = arith.negf %86 : vector<8x1xf32>
    %88 = math.exp %87 : vector<8x1xf32>
    %cst_24 = arith.constant 1.000000e+00 : f32
    %89 = vector.broadcast %cst_24 : f32 to vector<8x1xf32>
    %90 = arith.addf %89, %88 : vector<8x1xf32>
    %91 = arith.divf %89, %90 : vector<8x1xf32>
    %92 = vector.extract_strided_slice %91 {offsets = [0, 0], sizes = [1, 1], strides = [1, 1]} : vector<8x1xf32> to vector<1x1xf32>
    %93 = vector.extract_strided_slice %91 {offsets = [1, 0], sizes = [3, 1], strides = [1, 1]} : vector<8x1xf32> to vector<3x1xf32>
    %c1_i32_25 = arith.constant 1 : i32
    %94 = tpu.dynamic_rotate %57 by %c1_i32_25 dim 1 : vector<3x128xf32>, i32 -> vector<3x128xf32>
    %95 = vector.shape_cast %93 : vector<3x1xf32> to vector<3x1xf32>
    %96 = vector.broadcast %95 : vector<3x1xf32> to vector<3x128xf32>
    %97 = arith.select %6, %96, %94 : vector<3x128xi1>, vector<3x128xf32>
    %c127_i32_26 = arith.constant 127 : i32
    %98 = tpu.dynamic_rotate %57 by %c127_i32_26 dim 1 : vector<3x128xf32>, i32 -> vector<3x128xf32>
    %99 = arith.subf %97, %98 : vector<3x128xf32>
    %100 = vector.broadcast %92 : vector<1x1xf32> to vector<3x128xf32>
    %101 = arith.mulf %100, %99 : vector<3x128xf32>
    %102 = arith.addf %98, %101 : vector<3x128xf32>
    %cst_27 = arith.constant 0.000000e+00 : f32
    %103 = vector.broadcast %cst_27 : f32 to vector<3x128xf32>
    %104 = arith.select %8, %102, %103 : vector<3x128xi1>, vector<3x128xf32>
    %c2_i32 = arith.constant 2 : i32
    %105 = arith.index_cast %c2_i32 : i32 to index
    %c0_28 = arith.constant 0 : index
    %106 = vector.load %arg0[%105, %c0_28] : memref<8x32xf32, #tpu.memory_space<vmem>>, vector<1x32xf32>
    %cst_29 = arith.constant 0.000000e+00 : f32
    %107 = vector.broadcast %cst_29 : f32 to vector<1x32xf32>
    %108 = vector.extract_strided_slice %104 {offsets = [0, 0], sizes = [1, 1], strides = [1, 1]} : vector<3x128xf32> to vector<1x1xf32>
    %109 = vector.extract_strided_slice %1 {offsets = [0, 0], sizes = [1, 32], strides = [1, 1]} : vector<3x32xf32> to vector<1x32xf32>
    %110 = vector.broadcast %108 : vector<1x1xf32> to vector<1x32xf32>
    %111 = arith.mulf %110, %109 : vector<1x32xf32>
    %112 = arith.addf %107, %111 : vector<1x32xf32>
    %113 = vector.extract_strided_slice %104 {offsets = [1, 0], sizes = [1, 1], strides = [1, 1]} : vector<3x128xf32> to vector<1x1xf32>
    %114 = vector.extract_strided_slice %1 {offsets = [1, 0], sizes = [1, 32], strides = [1, 1]} : vector<3x32xf32> to vector<1x32xf32>
    %115 = vector.broadcast %113 : vector<1x1xf32> to vector<1x32xf32>
    %116 = arith.mulf %115, %114 : vector<1x32xf32>
    %117 = arith.addf %112, %116 : vector<1x32xf32>
    %118 = vector.extract_strided_slice %104 {offsets = [2, 0], sizes = [1, 1], strides = [1, 1]} : vector<3x128xf32> to vector<1x1xf32>
    %119 = vector.extract_strided_slice %1 {offsets = [2, 0], sizes = [1, 32], strides = [1, 1]} : vector<3x32xf32> to vector<1x32xf32>
    %120 = vector.broadcast %118 : vector<1x1xf32> to vector<1x32xf32>
    %121 = arith.mulf %120, %119 : vector<1x32xf32>
    %122 = arith.addf %117, %121 : vector<1x32xf32>
    %cst_30 = arith.constant dense<0.000000e+00> : vector<1x32xf32>
    %123 = tpu.matmul %79, %0, %cst_30 {dimension_numbers = #tpu.dot_dimension_numbers<[1], [0], [0], [1], [0, 0, 1, 1], [], []>} : vector<1x32xf32>, vector<32x32xf32>, vector<1x32xf32> -> vector<1x32xf32>
    %124 = arith.addf %106, %123 : vector<1x32xf32>
    %125 = arith.addf %124, %122 : vector<1x32xf32>
    %126 = math.tanh %125 : vector<1x32xf32>
    %127 = arith.index_cast %c2_i32 : i32 to index
    %c0_31 = arith.constant 0 : index
    %128 = vector.load %arg12[%127, %c0_31] : memref<8x32xf32, #tpu.memory_space<vmem>>, vector<1x32xf32>
    tpu.vector_store %arg12[%127, %c0_31], %126 {strides = array<i32>} : memref<8x32xf32, #tpu.memory_space<vmem>>, vector<1x32xf32>,
    %129 = vector.broadcast %126 : vector<1x32xf32> to vector<8x32xf32>
    %130 = arith.mulf %129, %2 : vector<8x32xf32>
    %cst_32 = arith.constant dense<0.000000e+00> : vector<8xf32>
    %131 = vector.multi_reduction <add>, %130, %cst_32 [1] : vector<8x32xf32> to vector<8xf32>
    %132 = vector.shape_cast %131 : vector<8xf32> to vector<8x1xf32>
    %133 = arith.addf %132, %3 : vector<8x1xf32>
    %134 = arith.negf %133 : vector<8x1xf32>
    %135 = math.exp %134 : vector<8x1xf32>
    %cst_33 = arith.constant 1.000000e+00 : f32
    %136 = vector.broadcast %cst_33 : f32 to vector<8x1xf32>
    %137 = arith.addf %136, %135 : vector<8x1xf32>
    %138 = arith.divf %136, %137 : vector<8x1xf32>
    %139 = vector.extract_strided_slice %138 {offsets = [0, 0], sizes = [1, 1], strides = [1, 1]} : vector<8x1xf32> to vector<1x1xf32>
    %140 = vector.extract_strided_slice %138 {offsets = [1, 0], sizes = [3, 1], strides = [1, 1]} : vector<8x1xf32> to vector<3x1xf32>
    %c1_i32_34 = arith.constant 1 : i32
    %141 = tpu.dynamic_rotate %104 by %c1_i32_34 dim 1 : vector<3x128xf32>, i32 -> vector<3x128xf32>
    %142 = vector.shape_cast %140 : vector<3x1xf32> to vector<3x1xf32>
    %143 = vector.broadcast %142 : vector<3x1xf32> to vector<3x128xf32>
    %144 = arith.select %6, %143, %141 : vector<3x128xi1>, vector<3x128xf32>
    %c127_i32_35 = arith.constant 127 : i32
    %145 = tpu.dynamic_rotate %104 by %c127_i32_35 dim 1 : vector<3x128xf32>, i32 -> vector<3x128xf32>
    %146 = arith.subf %144, %145 : vector<3x128xf32>
    %147 = vector.broadcast %139 : vector<1x1xf32> to vector<3x128xf32>
    %148 = arith.mulf %147, %146 : vector<3x128xf32>
    %149 = arith.addf %145, %148 : vector<3x128xf32>
    %cst_36 = arith.constant 0.000000e+00 : f32
    %150 = vector.broadcast %cst_36 : f32 to vector<3x128xf32>
    %151 = arith.select %8, %149, %150 : vector<3x128xi1>, vector<3x128xf32>
    %c3_i32 = arith.constant 3 : i32
    %152 = arith.index_cast %c3_i32 : i32 to index
    %c0_37 = arith.constant 0 : index
    %153 = vector.load %arg0[%152, %c0_37] : memref<8x32xf32, #tpu.memory_space<vmem>>, vector<1x32xf32>
    %cst_38 = arith.constant 0.000000e+00 : f32
    %154 = vector.broadcast %cst_38 : f32 to vector<1x32xf32>
    %155 = vector.extract_strided_slice %151 {offsets = [0, 0], sizes = [1, 1], strides = [1, 1]} : vector<3x128xf32> to vector<1x1xf32>
    %156 = vector.extract_strided_slice %1 {offsets = [0, 0], sizes = [1, 32], strides = [1, 1]} : vector<3x32xf32> to vector<1x32xf32>
    %157 = vector.broadcast %155 : vector<1x1xf32> to vector<1x32xf32>
    %158 = arith.mulf %157, %156 : vector<1x32xf32>
    %159 = arith.addf %154, %158 : vector<1x32xf32>
    %160 = vector.extract_strided_slice %151 {offsets = [1, 0], sizes = [1, 1], strides = [1, 1]} : vector<3x128xf32> to vector<1x1xf32>
    %161 = vector.extract_strided_slice %1 {offsets = [1, 0], sizes = [1, 32], strides = [1, 1]} : vector<3x32xf32> to vector<1x32xf32>
    %162 = vector.broadcast %160 : vector<1x1xf32> to vector<1x32xf32>
    %163 = arith.mulf %162, %161 : vector<1x32xf32>
    %164 = arith.addf %159, %163 : vector<1x32xf32>
    %165 = vector.extract_strided_slice %151 {offsets = [2, 0], sizes = [1, 1], strides = [1, 1]} : vector<3x128xf32> to vector<1x1xf32>
    %166 = vector.extract_strided_slice %1 {offsets = [2, 0], sizes = [1, 32], strides = [1, 1]} : vector<3x32xf32> to vector<1x32xf32>
    %167 = vector.broadcast %165 : vector<1x1xf32> to vector<1x32xf32>
    %168 = arith.mulf %167, %166 : vector<1x32xf32>
    %169 = arith.addf %164, %168 : vector<1x32xf32>
    %cst_39 = arith.constant dense<0.000000e+00> : vector<1x32xf32>
    %170 = tpu.matmul %126, %0, %cst_39 {dimension_numbers = #tpu.dot_dimension_numbers<[1], [0], [0], [1], [0, 0, 1, 1], [], []>} : vector<1x32xf32>, vector<32x32xf32>, vector<1x32xf32> -> vector<1x32xf32>
    %171 = arith.addf %153, %170 : vector<1x32xf32>
    %172 = arith.addf %171, %169 : vector<1x32xf32>
    %173 = math.tanh %172 : vector<1x32xf32>
    %174 = arith.index_cast %c3_i32 : i32 to index
    %c0_40 = arith.constant 0 : index
    %175 = vector.load %arg12[%174, %c0_40] : memref<8x32xf32, #tpu.memory_space<vmem>>, vector<1x32xf32>
    tpu.vector_store %arg12[%174, %c0_40], %173 {strides = array<i32>} : memref<8x32xf32, #tpu.memory_space<vmem>>, vector<1x32xf32>,
    %176 = vector.broadcast %173 : vector<1x32xf32> to vector<8x32xf32>
    %177 = arith.mulf %176, %2 : vector<8x32xf32>
    %cst_41 = arith.constant dense<0.000000e+00> : vector<8xf32>
    %178 = vector.multi_reduction <add>, %177, %cst_41 [1] : vector<8x32xf32> to vector<8xf32>
    %179 = vector.shape_cast %178 : vector<8xf32> to vector<8x1xf32>
    %180 = arith.addf %179, %3 : vector<8x1xf32>
    %181 = arith.negf %180 : vector<8x1xf32>
    %182 = math.exp %181 : vector<8x1xf32>
    %cst_42 = arith.constant 1.000000e+00 : f32
    %183 = vector.broadcast %cst_42 : f32 to vector<8x1xf32>
    %184 = arith.addf %183, %182 : vector<8x1xf32>
    %185 = arith.divf %183, %184 : vector<8x1xf32>
    %186 = vector.extract_strided_slice %185 {offsets = [0, 0], sizes = [1, 1], strides = [1, 1]} : vector<8x1xf32> to vector<1x1xf32>
    %187 = vector.extract_strided_slice %185 {offsets = [1, 0], sizes = [3, 1], strides = [1, 1]} : vector<8x1xf32> to vector<3x1xf32>
    %c1_i32_43 = arith.constant 1 : i32
    %188 = tpu.dynamic_rotate %151 by %c1_i32_43 dim 1 : vector<3x128xf32>, i32 -> vector<3x128xf32>
    %189 = vector.shape_cast %187 : vector<3x1xf32> to vector<3x1xf32>
    %190 = vector.broadcast %189 : vector<3x1xf32> to vector<3x128xf32>
    %191 = arith.select %6, %190, %188 : vector<3x128xi1>, vector<3x128xf32>
    %c127_i32_44 = arith.constant 127 : i32
    %192 = tpu.dynamic_rotate %151 by %c127_i32_44 dim 1 : vector<3x128xf32>, i32 -> vector<3x128xf32>
    %193 = arith.subf %191, %192 : vector<3x128xf32>
    %194 = vector.broadcast %186 : vector<1x1xf32> to vector<3x128xf32>
    %195 = arith.mulf %194, %193 : vector<3x128xf32>
    %196 = arith.addf %192, %195 : vector<3x128xf32>
    %cst_45 = arith.constant 0.000000e+00 : f32
    %197 = vector.broadcast %cst_45 : f32 to vector<3x128xf32>
    %198 = arith.select %8, %196, %197 : vector<3x128xi1>, vector<3x128xf32>
    %c4_i32 = arith.constant 4 : i32
    %199 = arith.index_cast %c4_i32 : i32 to index
    %c0_46 = arith.constant 0 : index
    %200 = vector.load %arg0[%199, %c0_46] : memref<8x32xf32, #tpu.memory_space<vmem>>, vector<1x32xf32>
    %cst_47 = arith.constant 0.000000e+00 : f32
    %201 = vector.broadcast %cst_47 : f32 to vector<1x32xf32>
    %202 = vector.extract_strided_slice %198 {offsets = [0, 0], sizes = [1, 1], strides = [1, 1]} : vector<3x128xf32> to vector<1x1xf32>
    %203 = vector.extract_strided_slice %1 {offsets = [0, 0], sizes = [1, 32], strides = [1, 1]} : vector<3x32xf32> to vector<1x32xf32>
    %204 = vector.broadcast %202 : vector<1x1xf32> to vector<1x32xf32>
    %205 = arith.mulf %204, %203 : vector<1x32xf32>
    %206 = arith.addf %201, %205 : vector<1x32xf32>
    %207 = vector.extract_strided_slice %198 {offsets = [1, 0], sizes = [1, 1], strides = [1, 1]} : vector<3x128xf32> to vector<1x1xf32>
    %208 = vector.extract_strided_slice %1 {offsets = [1, 0], sizes = [1, 32], strides = [1, 1]} : vector<3x32xf32> to vector<1x32xf32>
    %209 = vector.broadcast %207 : vector<1x1xf32> to vector<1x32xf32>
    %210 = arith.mulf %209, %208 : vector<1x32xf32>
    %211 = arith.addf %206, %210 : vector<1x32xf32>
    %212 = vector.extract_strided_slice %198 {offsets = [2, 0], sizes = [1, 1], strides = [1, 1]} : vector<3x128xf32> to vector<1x1xf32>
    %213 = vector.extract_strided_slice %1 {offsets = [2, 0], sizes = [1, 32], strides = [1, 1]} : vector<3x32xf32> to vector<1x32xf32>
    %214 = vector.broadcast %212 : vector<1x1xf32> to vector<1x32xf32>
    %215 = arith.mulf %214, %213 : vector<1x32xf32>
    %216 = arith.addf %211, %215 : vector<1x32xf32>
    %cst_48 = arith.constant dense<0.000000e+00> : vector<1x32xf32>
    %217 = tpu.matmul %173, %0, %cst_48 {dimension_numbers = #tpu.dot_dimension_numbers<[1], [0], [0], [1], [0, 0, 1, 1], [], []>} : vector<1x32xf32>, vector<32x32xf32>, vector<1x32xf32> -> vector<1x32xf32>
    %218 = arith.addf %200, %217 : vector<1x32xf32>
    %219 = arith.addf %218, %216 : vector<1x32xf32>
    %220 = math.tanh %219 : vector<1x32xf32>
    %221 = arith.index_cast %c4_i32 : i32 to index
    %c0_49 = arith.constant 0 : index
    %222 = vector.load %arg12[%221, %c0_49] : memref<8x32xf32, #tpu.memory_space<vmem>>, vector<1x32xf32>
    tpu.vector_store %arg12[%221, %c0_49], %220 {strides = array<i32>} : memref<8x32xf32, #tpu.memory_space<vmem>>, vector<1x32xf32>,
    %223 = vector.broadcast %220 : vector<1x32xf32> to vector<8x32xf32>
    %224 = arith.mulf %223, %2 : vector<8x32xf32>
    %cst_50 = arith.constant dense<0.000000e+00> : vector<8xf32>
    %225 = vector.multi_reduction <add>, %224, %cst_50 [1] : vector<8x32xf32> to vector<8xf32>
    %226 = vector.shape_cast %225 : vector<8xf32> to vector<8x1xf32>
    %227 = arith.addf %226, %3 : vector<8x1xf32>
    %228 = arith.negf %227 : vector<8x1xf32>
    %229 = math.exp %228 : vector<8x1xf32>
    %cst_51 = arith.constant 1.000000e+00 : f32
    %230 = vector.broadcast %cst_51 : f32 to vector<8x1xf32>
    %231 = arith.addf %230, %229 : vector<8x1xf32>
    %232 = arith.divf %230, %231 : vector<8x1xf32>
    %233 = vector.extract_strided_slice %232 {offsets = [0, 0], sizes = [1, 1], strides = [1, 1]} : vector<8x1xf32> to vector<1x1xf32>
    %234 = vector.extract_strided_slice %232 {offsets = [1, 0], sizes = [3, 1], strides = [1, 1]} : vector<8x1xf32> to vector<3x1xf32>
    %c1_i32_52 = arith.constant 1 : i32
    %235 = tpu.dynamic_rotate %198 by %c1_i32_52 dim 1 : vector<3x128xf32>, i32 -> vector<3x128xf32>
    %236 = vector.shape_cast %234 : vector<3x1xf32> to vector<3x1xf32>
    %237 = vector.broadcast %236 : vector<3x1xf32> to vector<3x128xf32>
    %238 = arith.select %6, %237, %235 : vector<3x128xi1>, vector<3x128xf32>
    %c127_i32_53 = arith.constant 127 : i32
    %239 = tpu.dynamic_rotate %198 by %c127_i32_53 dim 1 : vector<3x128xf32>, i32 -> vector<3x128xf32>
    %240 = arith.subf %238, %239 : vector<3x128xf32>
    %241 = vector.broadcast %233 : vector<1x1xf32> to vector<3x128xf32>
    %242 = arith.mulf %241, %240 : vector<3x128xf32>
    %243 = arith.addf %239, %242 : vector<3x128xf32>
    %cst_54 = arith.constant 0.000000e+00 : f32
    %244 = vector.broadcast %cst_54 : f32 to vector<3x128xf32>
    %245 = arith.select %8, %243, %244 : vector<3x128xi1>, vector<3x128xf32>
    %c5_i32 = arith.constant 5 : i32
    %246 = arith.index_cast %c5_i32 : i32 to index
    %c0_55 = arith.constant 0 : index
    %247 = vector.load %arg0[%246, %c0_55] : memref<8x32xf32, #tpu.memory_space<vmem>>, vector<1x32xf32>
    %cst_56 = arith.constant 0.000000e+00 : f32
    %248 = vector.broadcast %cst_56 : f32 to vector<1x32xf32>
    %249 = vector.extract_strided_slice %245 {offsets = [0, 0], sizes = [1, 1], strides = [1, 1]} : vector<3x128xf32> to vector<1x1xf32>
    %250 = vector.extract_strided_slice %1 {offsets = [0, 0], sizes = [1, 32], strides = [1, 1]} : vector<3x32xf32> to vector<1x32xf32>
    %251 = vector.broadcast %249 : vector<1x1xf32> to vector<1x32xf32>
    %252 = arith.mulf %251, %250 : vector<1x32xf32>
    %253 = arith.addf %248, %252 : vector<1x32xf32>
    %254 = vector.extract_strided_slice %245 {offsets = [1, 0], sizes = [1, 1], strides = [1, 1]} : vector<3x128xf32> to vector<1x1xf32>
    %255 = vector.extract_strided_slice %1 {offsets = [1, 0], sizes = [1, 32], strides = [1, 1]} : vector<3x32xf32> to vector<1x32xf32>
    %256 = vector.broadcast %254 : vector<1x1xf32> to vector<1x32xf32>
    %257 = arith.mulf %256, %255 : vector<1x32xf32>
    %258 = arith.addf %253, %257 : vector<1x32xf32>
    %259 = vector.extract_strided_slice %245 {offsets = [2, 0], sizes = [1, 1], strides = [1, 1]} : vector<3x128xf32> to vector<1x1xf32>
    %260 = vector.extract_strided_slice %1 {offsets = [2, 0], sizes = [1, 32], strides = [1, 1]} : vector<3x32xf32> to vector<1x32xf32>
    %261 = vector.broadcast %259 : vector<1x1xf32> to vector<1x32xf32>
    %262 = arith.mulf %261, %260 : vector<1x32xf32>
    %263 = arith.addf %258, %262 : vector<1x32xf32>
    %cst_57 = arith.constant dense<0.000000e+00> : vector<1x32xf32>
    %264 = tpu.matmul %220, %0, %cst_57 {dimension_numbers = #tpu.dot_dimension_numbers<[1], [0], [0], [1], [0, 0, 1, 1], [], []>} : vector<1x32xf32>, vector<32x32xf32>, vector<1x32xf32> -> vector<1x32xf32>
    %265 = arith.addf %247, %264 : vector<1x32xf32>
    %266 = arith.addf %265, %263 : vector<1x32xf32>
    %267 = math.tanh %266 : vector<1x32xf32>
    %268 = arith.index_cast %c5_i32 : i32 to index
    %c0_58 = arith.constant 0 : index
    %269 = vector.load %arg12[%268, %c0_58] : memref<8x32xf32, #tpu.memory_space<vmem>>, vector<1x32xf32>
    tpu.vector_store %arg12[%268, %c0_58], %267 {strides = array<i32>} : memref<8x32xf32, #tpu.memory_space<vmem>>, vector<1x32xf32>,
    %270 = vector.broadcast %267 : vector<1x32xf32> to vector<8x32xf32>
    %271 = arith.mulf %270, %2 : vector<8x32xf32>
    %cst_59 = arith.constant dense<0.000000e+00> : vector<8xf32>
    %272 = vector.multi_reduction <add>, %271, %cst_59 [1] : vector<8x32xf32> to vector<8xf32>
    %273 = vector.shape_cast %272 : vector<8xf32> to vector<8x1xf32>
    %274 = arith.addf %273, %3 : vector<8x1xf32>
    %275 = arith.negf %274 : vector<8x1xf32>
    %276 = math.exp %275 : vector<8x1xf32>
    %cst_60 = arith.constant 1.000000e+00 : f32
    %277 = vector.broadcast %cst_60 : f32 to vector<8x1xf32>
    %278 = arith.addf %277, %276 : vector<8x1xf32>
    %279 = arith.divf %277, %278 : vector<8x1xf32>
    %280 = vector.extract_strided_slice %279 {offsets = [0, 0], sizes = [1, 1], strides = [1, 1]} : vector<8x1xf32> to vector<1x1xf32>
    %281 = vector.extract_strided_slice %279 {offsets = [1, 0], sizes = [3, 1], strides = [1, 1]} : vector<8x1xf32> to vector<3x1xf32>
    %c1_i32_61 = arith.constant 1 : i32
    %282 = tpu.dynamic_rotate %245 by %c1_i32_61 dim 1 : vector<3x128xf32>, i32 -> vector<3x128xf32>
    %283 = vector.shape_cast %281 : vector<3x1xf32> to vector<3x1xf32>
    %284 = vector.broadcast %283 : vector<3x1xf32> to vector<3x128xf32>
    %285 = arith.select %6, %284, %282 : vector<3x128xi1>, vector<3x128xf32>
    %c127_i32_62 = arith.constant 127 : i32
    %286 = tpu.dynamic_rotate %245 by %c127_i32_62 dim 1 : vector<3x128xf32>, i32 -> vector<3x128xf32>
    %287 = arith.subf %285, %286 : vector<3x128xf32>
    %288 = vector.broadcast %280 : vector<1x1xf32> to vector<3x128xf32>
    %289 = arith.mulf %288, %287 : vector<3x128xf32>
    %290 = arith.addf %286, %289 : vector<3x128xf32>
    %cst_63 = arith.constant 0.000000e+00 : f32
    %291 = vector.broadcast %cst_63 : f32 to vector<3x128xf32>
    %292 = arith.select %8, %290, %291 : vector<3x128xi1>, vector<3x128xf32>
    %c6_i32 = arith.constant 6 : i32
    %293 = arith.index_cast %c6_i32 : i32 to index
    %c0_64 = arith.constant 0 : index
    %294 = vector.load %arg0[%293, %c0_64] : memref<8x32xf32, #tpu.memory_space<vmem>>, vector<1x32xf32>
    %cst_65 = arith.constant 0.000000e+00 : f32
    %295 = vector.broadcast %cst_65 : f32 to vector<1x32xf32>
    %296 = vector.extract_strided_slice %292 {offsets = [0, 0], sizes = [1, 1], strides = [1, 1]} : vector<3x128xf32> to vector<1x1xf32>
    %297 = vector.extract_strided_slice %1 {offsets = [0, 0], sizes = [1, 32], strides = [1, 1]} : vector<3x32xf32> to vector<1x32xf32>
    %298 = vector.broadcast %296 : vector<1x1xf32> to vector<1x32xf32>
    %299 = arith.mulf %298, %297 : vector<1x32xf32>
    %300 = arith.addf %295, %299 : vector<1x32xf32>
    %301 = vector.extract_strided_slice %292 {offsets = [1, 0], sizes = [1, 1], strides = [1, 1]} : vector<3x128xf32> to vector<1x1xf32>
    %302 = vector.extract_strided_slice %1 {offsets = [1, 0], sizes = [1, 32], strides = [1, 1]} : vector<3x32xf32> to vector<1x32xf32>
    %303 = vector.broadcast %301 : vector<1x1xf32> to vector<1x32xf32>
    %304 = arith.mulf %303, %302 : vector<1x32xf32>
    %305 = arith.addf %300, %304 : vector<1x32xf32>
    %306 = vector.extract_strided_slice %292 {offsets = [2, 0], sizes = [1, 1], strides = [1, 1]} : vector<3x128xf32> to vector<1x1xf32>
    %307 = vector.extract_strided_slice %1 {offsets = [2, 0], sizes = [1, 32], strides = [1, 1]} : vector<3x32xf32> to vector<1x32xf32>
    %308 = vector.broadcast %306 : vector<1x1xf32> to vector<1x32xf32>
    %309 = arith.mulf %308, %307 : vector<1x32xf32>
    %310 = arith.addf %305, %309 : vector<1x32xf32>
    %cst_66 = arith.constant dense<0.000000e+00> : vector<1x32xf32>
    %311 = tpu.matmul %267, %0, %cst_66 {dimension_numbers = #tpu.dot_dimension_numbers<[1], [0], [0], [1], [0, 0, 1, 1], [], []>} : vector<1x32xf32>, vector<32x32xf32>, vector<1x32xf32> -> vector<1x32xf32>
    %312 = arith.addf %294, %311 : vector<1x32xf32>
    %313 = arith.addf %312, %310 : vector<1x32xf32>
    %314 = math.tanh %313 : vector<1x32xf32>
    %315 = arith.index_cast %c6_i32 : i32 to index
    %c0_67 = arith.constant 0 : index
    %316 = vector.load %arg12[%315, %c0_67] : memref<8x32xf32, #tpu.memory_space<vmem>>, vector<1x32xf32>
    tpu.vector_store %arg12[%315, %c0_67], %314 {strides = array<i32>} : memref<8x32xf32, #tpu.memory_space<vmem>>, vector<1x32xf32>,
    %317 = vector.broadcast %314 : vector<1x32xf32> to vector<8x32xf32>
    %318 = arith.mulf %317, %2 : vector<8x32xf32>
    %cst_68 = arith.constant dense<0.000000e+00> : vector<8xf32>
    %319 = vector.multi_reduction <add>, %318, %cst_68 [1] : vector<8x32xf32> to vector<8xf32>
    %320 = vector.shape_cast %319 : vector<8xf32> to vector<8x1xf32>
    %321 = arith.addf %320, %3 : vector<8x1xf32>
    %322 = arith.negf %321 : vector<8x1xf32>
    %323 = math.exp %322 : vector<8x1xf32>
    %cst_69 = arith.constant 1.000000e+00 : f32
    %324 = vector.broadcast %cst_69 : f32 to vector<8x1xf32>
    %325 = arith.addf %324, %323 : vector<8x1xf32>
    %326 = arith.divf %324, %325 : vector<8x1xf32>
    %327 = vector.extract_strided_slice %326 {offsets = [0, 0], sizes = [1, 1], strides = [1, 1]} : vector<8x1xf32> to vector<1x1xf32>
    %328 = vector.extract_strided_slice %326 {offsets = [1, 0], sizes = [3, 1], strides = [1, 1]} : vector<8x1xf32> to vector<3x1xf32>
    %c1_i32_70 = arith.constant 1 : i32
    %329 = tpu.dynamic_rotate %292 by %c1_i32_70 dim 1 : vector<3x128xf32>, i32 -> vector<3x128xf32>
    %330 = vector.shape_cast %328 : vector<3x1xf32> to vector<3x1xf32>
    %331 = vector.broadcast %330 : vector<3x1xf32> to vector<3x128xf32>
    %332 = arith.select %6, %331, %329 : vector<3x128xi1>, vector<3x128xf32>
    %c127_i32_71 = arith.constant 127 : i32
    %333 = tpu.dynamic_rotate %292 by %c127_i32_71 dim 1 : vector<3x128xf32>, i32 -> vector<3x128xf32>
    %334 = arith.subf %332, %333 : vector<3x128xf32>
    %335 = vector.broadcast %327 : vector<1x1xf32> to vector<3x128xf32>
    %336 = arith.mulf %335, %334 : vector<3x128xf32>
    %337 = arith.addf %333, %336 : vector<3x128xf32>
    %cst_72 = arith.constant 0.000000e+00 : f32
    %338 = vector.broadcast %cst_72 : f32 to vector<3x128xf32>
    %339 = arith.select %8, %337, %338 : vector<3x128xi1>, vector<3x128xf32>
    %c7_i32 = arith.constant 7 : i32
    %340 = arith.index_cast %c7_i32 : i32 to index
    %c0_73 = arith.constant 0 : index
    %341 = vector.load %arg0[%340, %c0_73] : memref<8x32xf32, #tpu.memory_space<vmem>>, vector<1x32xf32>
    %cst_74 = arith.constant 0.000000e+00 : f32
    %342 = vector.broadcast %cst_74 : f32 to vector<1x32xf32>
    %343 = vector.extract_strided_slice %339 {offsets = [0, 0], sizes = [1, 1], strides = [1, 1]} : vector<3x128xf32> to vector<1x1xf32>
    %344 = vector.extract_strided_slice %1 {offsets = [0, 0], sizes = [1, 32], strides = [1, 1]} : vector<3x32xf32> to vector<1x32xf32>
    %345 = vector.broadcast %343 : vector<1x1xf32> to vector<1x32xf32>
    %346 = arith.mulf %345, %344 : vector<1x32xf32>
    %347 = arith.addf %342, %346 : vector<1x32xf32>
    %348 = vector.extract_strided_slice %339 {offsets = [1, 0], sizes = [1, 1], strides = [1, 1]} : vector<3x128xf32> to vector<1x1xf32>
    %349 = vector.extract_strided_slice %1 {offsets = [1, 0], sizes = [1, 32], strides = [1, 1]} : vector<3x32xf32> to vector<1x32xf32>
    %350 = vector.broadcast %348 : vector<1x1xf32> to vector<1x32xf32>
    %351 = arith.mulf %350, %349 : vector<1x32xf32>
    %352 = arith.addf %347, %351 : vector<1x32xf32>
    %353 = vector.extract_strided_slice %339 {offsets = [2, 0], sizes = [1, 1], strides = [1, 1]} : vector<3x128xf32> to vector<1x1xf32>
    %354 = vector.extract_strided_slice %1 {offsets = [2, 0], sizes = [1, 32], strides = [1, 1]} : vector<3x32xf32> to vector<1x32xf32>
    %355 = vector.broadcast %353 : vector<1x1xf32> to vector<1x32xf32>
    %356 = arith.mulf %355, %354 : vector<1x32xf32>
    %357 = arith.addf %352, %356 : vector<1x32xf32>
    %cst_75 = arith.constant dense<0.000000e+00> : vector<1x32xf32>
    %358 = tpu.matmul %314, %0, %cst_75 {dimension_numbers = #tpu.dot_dimension_numbers<[1], [0], [0], [1], [0, 0, 1, 1], [], []>} : vector<1x32xf32>, vector<32x32xf32>, vector<1x32xf32> -> vector<1x32xf32>
    %359 = arith.addf %341, %358 : vector<1x32xf32>
    %360 = arith.addf %359, %357 : vector<1x32xf32>
    %361 = math.tanh %360 : vector<1x32xf32>
    %362 = arith.index_cast %c7_i32 : i32 to index
    %c0_76 = arith.constant 0 : index
    %363 = vector.load %arg12[%362, %c0_76] : memref<8x32xf32, #tpu.memory_space<vmem>>, vector<1x32xf32>
    tpu.vector_store %arg12[%362, %c0_76], %361 {strides = array<i32>} : memref<8x32xf32, #tpu.memory_space<vmem>>, vector<1x32xf32>,
    %364 = vector.broadcast %361 : vector<1x32xf32> to vector<8x32xf32>
    %365 = arith.mulf %364, %2 : vector<8x32xf32>
    %cst_77 = arith.constant dense<0.000000e+00> : vector<8xf32>
    %366 = vector.multi_reduction <add>, %365, %cst_77 [1] : vector<8x32xf32> to vector<8xf32>
    %367 = vector.shape_cast %366 : vector<8xf32> to vector<8x1xf32>
    %368 = arith.addf %367, %3 : vector<8x1xf32>
    %369 = arith.negf %368 : vector<8x1xf32>
    %370 = math.exp %369 : vector<8x1xf32>
    %cst_78 = arith.constant 1.000000e+00 : f32
    %371 = vector.broadcast %cst_78 : f32 to vector<8x1xf32>
    %372 = arith.addf %371, %370 : vector<8x1xf32>
    %373 = arith.divf %371, %372 : vector<8x1xf32>
    %374 = vector.extract_strided_slice %373 {offsets = [0, 0], sizes = [1, 1], strides = [1, 1]} : vector<8x1xf32> to vector<1x1xf32>
    %375 = vector.extract_strided_slice %373 {offsets = [1, 0], sizes = [3, 1], strides = [1, 1]} : vector<8x1xf32> to vector<3x1xf32>
    %c1_i32_79 = arith.constant 1 : i32
    %376 = tpu.dynamic_rotate %339 by %c1_i32_79 dim 1 : vector<3x128xf32>, i32 -> vector<3x128xf32>
    %377 = vector.shape_cast %375 : vector<3x1xf32> to vector<3x1xf32>
    %378 = vector.broadcast %377 : vector<3x1xf32> to vector<3x128xf32>
    %379 = arith.select %6, %378, %376 : vector<3x128xi1>, vector<3x128xf32>
    %c127_i32_80 = arith.constant 127 : i32
    %380 = tpu.dynamic_rotate %339 by %c127_i32_80 dim 1 : vector<3x128xf32>, i32 -> vector<3x128xf32>
    %381 = arith.subf %379, %380 : vector<3x128xf32>
    %382 = vector.broadcast %374 : vector<1x1xf32> to vector<3x128xf32>
    %383 = arith.mulf %382, %381 : vector<3x128xf32>
    %384 = arith.addf %380, %383 : vector<3x128xf32>
    %cst_81 = arith.constant 0.000000e+00 : f32
    %385 = vector.broadcast %cst_81 : f32 to vector<3x128xf32>
    %386 = arith.select %8, %384, %385 : vector<3x128xi1>, vector<3x128xf32>
    %c8_i32 = arith.constant 8 : i32
    %c0_82 = arith.constant 0 : index
    %c0_83 = arith.constant 0 : index
    %387 = vector.load %arg10[%c0_82, %c0_83] : memref<1x32xf32, #tpu.memory_space<vmem>>, vector<1x32xf32>
    tpu.vector_store %arg10[%c0_82, %c0_83], %361 {strides = array<i32>} : memref<1x32xf32, #tpu.memory_space<vmem>>, vector<1x32xf32>,
    %c0_84 = arith.constant 0 : index
    %c0_85 = arith.constant 0 : index
    %388 = vector.load %arg11[%c0_84, %c0_85] : memref<3x128xf32, #tpu.memory_space<vmem>>, vector<3x128xf32>
    tpu.vector_store %arg11[%c0_84, %c0_85], %386 {strides = array<i32>} : memref<3x128xf32, #tpu.memory_space<vmem>>, vector<3x128xf32>,
    %c0_86 = arith.constant 0 : index
    %c0_87 = arith.constant 0 : index
    %389 = vector.load %arg12[%c0_86, %c0_87] : memref<8x32xf32, #tpu.memory_space<vmem>>, vector<8x32xf32>
    %c0_88 = arith.constant 0 : index
    %c0_89 = arith.constant 0 : index
    %390 = vector.load %arg7[%c0_88, %c0_89] : memref<32x128xf32, #tpu.memory_space<vmem>>, vector<32x128xf32>
    %cst_90 = arith.constant dense<0.000000e+00> : vector<8x128xf32>
    %391 = tpu.matmul %389, %390, %cst_90 {dimension_numbers = #tpu.dot_dimension_numbers<[1], [0], [0], [1], [0, 0, 1, 1], [], []>} : vector<8x32xf32>, vector<32x128xf32>, vector<8x128xf32> -> vector<8x128xf32>
    %c0_91 = arith.constant 0 : index
    %c0_92 = arith.constant 0 : index
    %392 = vector.load %arg8[%c0_91, %c0_92] : memref<1x128xf32, #tpu.memory_space<vmem>>, vector<1x128xf32>
    %393 = vector.broadcast %392 : vector<1x128xf32> to vector<8x128xf32>
    %394 = arith.addf %391, %393 : vector<8x128xf32>
    %395 = arith.negf %394 : vector<8x128xf32>
    %396 = math.exp %395 : vector<8x128xf32>
    %cst_93 = arith.constant 1.000000e+00 : f32
    %397 = vector.broadcast %cst_93 : f32 to vector<8x128xf32>
    %398 = arith.addf %397, %396 : vector<8x128xf32>
    %399 = arith.divf %397, %398 : vector<8x128xf32>
    %c0_94 = arith.constant 0 : index
    %c0_95 = arith.constant 0 : index
    %400 = vector.load %arg9[%c0_94, %c0_95] : memref<8x128xf32, #tpu.memory_space<vmem>>, vector<8x128xf32>
    tpu.vector_store %arg9[%c0_94, %c0_95], %399 {strides = array<i32>} : memref<8x128xf32, #tpu.memory_space<vmem>>, vector<8x128xf32>,
    return
  }
}

</mosaic_0001>

<llo_original>
// kernel: srnn_forward_seq.1
$region0: #{srnn_forward_seq.1}
  #allocation0 [shape = 'u32[]', space=smem, size = 0x4, offset = 0x4, fixed_abs, tag = 'smem constant byte address 0x4 - core index']
  #allocation1 [shape = 'u32[144,128]{1,0:T(1,128)}', space=vmem, size = 0x12000, scoped, tag = 'internal scratch']
  #allocation2 [shape = 'f32[8,32]{1,0:T(8,128)}', space=vmem, size = 0x1000, scoped, tag = 'scratch operand']
  %s0 = inlined_call_operand.vmem [shape: f32[8,32], index: 0, kind: input, shape index: {}]
  %s1 = inlined_call_operand.vmem [shape: f32[1,32], index: 1, kind: input, shape index: {}]
  %s2 = inlined_call_operand.vmem [shape: f32[3,128], index: 2, kind: input, shape index: {}]
  %s3 = inlined_call_operand.vmem [shape: f32[32,32], index: 3, kind: input, shape index: {}]
  %s4 = inlined_call_operand.vmem [shape: f32[3,32], index: 4, kind: input, shape index: {}]
  %s5 = inlined_call_operand.vmem [shape: f32[8,32], index: 5, kind: input, shape index: {}]
  %s6 = inlined_call_operand.vmem [shape: f32[8,1], index: 6, kind: input, shape index: {}]
  %s7 = inlined_call_operand.vmem [shape: f32[32,128], index: 7, kind: input, shape index: {}]
  %s8 = inlined_call_operand.vmem [shape: f32[1,128], index: 8, kind: input, shape index: {}]
  %s9 = inlined_call_operand.hbm [shape: f32[8,128], index: 9, kind: output, shape index: {0}]
  %s10 = inlined_call_operand.hbm [shape: f32[1,32], index: 10, kind: output, shape index: {1}]
  %s11 = inlined_call_operand.vmem [shape: f32[3,128], index: 11, kind: output, shape index: {2}]
  %12 = xla_tuple %s9, %s10, %s11
  %s13 = sld [smem:[#allocation0]]
  $region62: #{srnn_forward_seq.1} parent=0
    _
  %s15 = ssub.s32 1, %s13
  %s16 = scalar_select 0, %s15, %s13
  $region1: #{srnn_forward_seq.1} parent=0
    #allocation3 [shape = 'u8[4096]{0}', space=vmem, size = 0x1000, scoped, tag = 'output window, operand 0, single buffered']
    #allocation4 [shape = 's32[1]{0}', space=sflag, size = 0x4, scoped, tag = 'scoped memory for srnn_forward_seq.1']
    #allocation5 [shape = 'u8[512]{0}', space=vmem, size = 0x400, scoped, tag = 'output window, operand 1, single buffered']
    #allocation6 [shape = 's32[1]{0}', space=sflag, size = 0x4, scoped, tag = 'scoped memory for srnn_forward_seq.1']
    %17 = vsyncpa [#allocation4], 0
    %18 = vsyncpa [#allocation6], 0
    // Predicated region
    $region2: #{srnn_forward_seq.1} parent=1 // pred_check
      _
    $region3: #{srnn_forward_seq.1} parent=1 // pred_check_branch
      %20 = sbr.rel (0) target = $region5
    $region4: #{srnn_forward_seq.1} parent=1 // pred_region
      _
    $region5: #{srnn_forward_seq.1} parent=1 // pred_fallthru
      _
    // Predicated region
    $region6: #{srnn_forward_seq.1} parent=1 // pred_check
      _
    $region7: #{srnn_forward_seq.1} parent=1 // pred_check_branch
      %22 = sbr.rel (0) target = $region9
    $region8: #{srnn_forward_seq.1} parent=1 // pred_region
      _
    $region9: #{srnn_forward_seq.1} parent=1 // pred_fallthru
      _
    // Predicated region
    $region10: #{srnn_forward_seq.1} parent=1 // pred_check
      _
    $region11: #{srnn_forward_seq.1} parent=1 // pred_check_branch
      %24 = sbr.rel (0) target = $region13
    $region12: #{srnn_forward_seq.1} parent=1 // pred_region
      _
    $region13: #{srnn_forward_seq.1} parent=1 // pred_fallthru
      _
    // Predicated region
    $region14: #{srnn_forward_seq.1} parent=1 // pred_check
      _
    $region15: #{srnn_forward_seq.1} parent=1 // pred_check_branch
      %26 = sbr.rel (0) target = $region17
    $region16: #{srnn_forward_seq.1} parent=1 // pred_region
      _
    $region17: #{srnn_forward_seq.1} parent=1 // pred_fallthru
      _
    // Predicated region
    $region18: #{srnn_forward_seq.1} parent=1 // pred_check
      _
    $region19: #{srnn_forward_seq.1} parent=1 // pred_check_branch
      %28 = sbr.rel (0) target = $region21
    $region20: #{srnn_forward_seq.1} parent=1 // pred_region
      _
    $region21: #{srnn_forward_seq.1} parent=1 // pred_fallthru
      _
    // Predicated region
    $region22: #{srnn_forward_seq.1} parent=1 // pred_check
      _
    $region23: #{srnn_forward_seq.1} parent=1 // pred_check_branch
      %30 = sbr.rel (0) target = $region25
    $region24: #{srnn_forward_seq.1} parent=1 // pred_region
      _
    $region25: #{srnn_forward_seq.1} parent=1 // pred_fallthru
      _
    // Predicated region
    $region26: #{srnn_forward_seq.1} parent=1 // pred_check
      _
    $region27: #{srnn_forward_seq.1} parent=1 // pred_check_branch
      %32 = sbr.rel (0) target = $region29
    $region28: #{srnn_forward_seq.1} parent=1 // pred_region
      _
    $region29: #{srnn_forward_seq.1} parent=1 // pred_fallthru
      _
    // Predicated region
    $region30: #{srnn_forward_seq.1} parent=1 // pred_check
      _
    $region31: #{srnn_forward_seq.1} parent=1 // pred_check_branch
      %34 = sbr.rel (0) target = $region33
    $region32: #{srnn_forward_seq.1} parent=1 // pred_region
      _
    $region33: #{srnn_forward_seq.1} parent=1 // pred_fallthru
      _
    // Predicated region
    $region34: #{srnn_forward_seq.1} parent=1 // pred_check
      _
    $region35: #{srnn_forward_seq.1} parent=1 // pred_check_branch
      %36 = sbr.rel (0) target = $region37
    $region36: #{srnn_forward_seq.1} parent=1 // pred_region
      _
    $region37: #{srnn_forward_seq.1} parent=1 // pred_fallthru
      _
    %v37 = vld [vmem:[%s3] sm:$0xff]
    %v38 = vld [vmem:[%s3 + $0x8] sm:$0xff]
    %v39 = vld [vmem:[%s3 + $0x10] sm:$0xff]
    %v40 = vld [vmem:[%s3 + $0x18] sm:$0xff]
    %v41 = vld [vmem:[%s4] sm:$0x7]
    %v42 = vld [vmem:[%s5] sm:$0xff]
    %v43 = vld [vmem:[%s6] sm:$0xff]
    %v44 = vlaneseq
    %v45 = vand.u32 %v44, 127
    %vm46 = vcmp.eq.s32.totalorder %v45, 0
    %vm47 = vcmp.lt.s32.totalorder %v45, 104
    %v48 = vld [vmem:[%s1] sm:$0x1]
    %v49 = vld [vmem:[%s2] sm:$0x7]
    %v50 = vld [vmem:[%s0] sm:$0x1]
    %52 = vset.pattern.permute.xlu0 0
    %53 = vperm.xlu0 %52, %v49
    %v54 = vpop.permute.xlu0 %53
    %v56 = vmul.f32 %v54, %v41
    %v57 = vadd.f32 %v56, 0.0
    %v59 = vrot.slane %v56, 1
    %v61 = vadd.f32 %v57, %v59
    %v62 = vrot.slane %v56, 2
    %v64 = vadd.f32 %v61, %v62
    %vm65 = vcmask 261120
    %v67 = vsel %vm65, %v48, 0
    %69 = vmatprep.subr.mxu0 0.0
    %70 = vmatpush1.msra.mxu0 %v37
    %71 = vmatprep.subr.mxu0 0.0
    %72 = vmatpush1.msra.mxu0 %v38
    %73 = vmatprep.subr.mxu0 0.0
    %74 = vmatpush1.msra.mxu0 %v39
    %75 = vmatprep.subr.mxu0 0.0
    %76 = vmatpush1.msra.mxu0 %v40
    %77 = vmatprep.subr.mxu0 0.0
    %78 = vmatpush1.msra.mxu0 0.0
    %79 = vmatprep.subr.mxu0 0.0
    %80 = vmatpush1.msra.mxu0 0.0
    %81 = vmatprep.subr.mxu0 0.0
    %82 = vmatpush1.msra.mxu0 0.0
    %83 = vmatprep.subr.mxu0 0.0
    %84 = vmatpush1.msra.mxu0 0.0
    %85 = vmatprep.subr.mxu0 0.0
    %86 = vmatpush1.msra.mxu0 0.0
    %87 = vmatprep.subr.mxu0 0.0
    %88 = vmatpush1.msra.mxu0 0.0
    %89 = vmatprep.subr.mxu0 0.0
    %90 = vmatpush1.msra.mxu0 0.0
    %91 = vmatprep.subr.mxu0 0.0
    %92 = vmatpush1.msra.mxu0 0.0
    %93 = vmatprep.subr.mxu0 0.0
    %94 = vmatpush1.msra.mxu0 0.0
    %95 = vmatprep.subr.mxu0 0.0
    %96 = vmatpush1.msra.mxu0 0.0
    %97 = vmatprep.subr.mxu0 0.0
    %98 = vmatpush1.msra.mxu0 0.0
    %99 = vmatprep.subr.mxu0 0.0
    %100 = vmatpush1.msra.mxu0 0.0
    %101 = vmatprep.subr.mxu0 0.0
    %102 = vmatpush1.msra.mxu0 0.0
    %103 = vmatprep.subr.mxu0 0.0
    %104 = vmatpush1.msra.mxu0 0.0
    %105 = vmatprep.subr.mxu0 0.0
    %106 = vmatpush1.msra.mxu0 0.0
    %107 = vmatprep.subr.mxu0 0.0
    %108 = vmatpush1.msra.mxu0 0.0
    %109 = vmatprep.subr.mxu0 0.0
    %110 = vmatpush1.msra.mxu0 0.0
    %111 = vmatprep.subr.mxu0 0.0
    %112 = vmatpush1.msra.mxu0 0.0
    %113 = vmatprep.subr.mxu0 0.0
    %114 = vmatpush1.msra.mxu0 0.0
    %115 = vmatprep.subr.mxu0 0.0
    %116 = vmatpush1.msra.mxu0 0.0
    %117 = vmatprep.subr.mxu0 0.0
    %118 = vmatpush1.msra.mxu0 0.0
    %119 = vmatprep.subr.mxu0 0.0
    %120 = vmatpush1.msra.mxu0 0.0
    %121 = vmatprep.subr.mxu0 0.0
    %122 = vmatpush1.msra.mxu0 0.0
    %123 = vmatprep.subr.mxu0 0.0
    %124 = vmatpush1.msra.mxu0 0.0
    %125 = vmatprep.subr.mxu0 0.0
    %126 = vmatpush1.msra.mxu0 0.0
    %127 = vmatprep.subr.mxu0 0.0
    %128 = vmatpush1.msra.mxu0 0.0
    %129 = vmatprep.subr.mxu0 0.0
    %130 = vmatpush1.msra.mxu0 0.0
    %131 = vmatprep.subr.mxu0 0.0
    %132 = vmatpush1.msra.mxu0 0.0
    %133 = vmatprep.mubr.f32.mxu0 0.0
    %134 = vmatmul.mubr.f32.gmra.mrb[0].mxu0 %v67
    %v135 = vpop.f32.mrb[0].mxu0
    %v136 = vadd.f32 0.0, %v135
    %v137 = vpop.f32.mrb[0].mxu0
    %138 = vdwg.mxu0
    %v139 = vadd.f32 %v50, %v136
    %v140 = vadd.f32 %v139, %v64
    %v141 = vtanh.pop %v140
    %vm142 = vcmask 253952
    %143 = vst.msk [vmem:[#allocation2] sm:$0x1] %vm142, %v141
    %v144 = vlaneseq
    %v145 = vshrl.u32 %v144, 7
    %v146 = vsub.s32 0, %v145
    %v147 = vrot.slane %v141, %v146
    %v148 = vmul.f32 %v147, %v42
    %v149 = vsel %vm65, %v148, 0.0
    %150 = vadd.xlane.f32.xlu0 %v149
    %v151 = vpop.xlane.xlu0 %150
    %v152 = vadd.f32 %v151, %v43
    %v153 = vxor.u32 %v152, 2147483648
    %v154 = vmul.f32 %v153, 1.442695
    %v155 = vpow.pop %v154
    %v156 = vadd.f32 %v155, 1.0
    %v157 = vrcp.pop %v156
    %v158 = vmul.f32 1.0, %v157
    %159 = vrot.lane.b32.xlu0 %v49, 1
    %v160 = vpop.permute.xlu0 %159
    %162 = vset.pattern.permute.xlu0 0
    %163 = vperm.xlu0 %162, %v158
    %v164 = vpop.permute.xlu0 %163
    %v167 = vrot.slane %v160, 7
    %v169 = vsel %vm46, %v164, %v167
    %170 = vrot.lane.b32.xlu0 %v49, 127
    %v171 = vpop.permute.xlu0 %170
    %v173 = vrot.slane %v171, 7
    %v175 = vsub.f32 %v169, %v173
    %s176 = vtos %v158
    %v177 = vstv %s176
    %v179 = vmul.f32 %v177, %v175
    %v181 = vrot.slane %v179, 1
    %v183 = vadd.f32 %v171, %v181
    %v184 = vsel %vm47, %v183, 0.0
    %v185 = vld [vmem:[%s0 + $0x1] sm:$0x1]
    %187 = vset.pattern.permute.xlu0 0
    %188 = vperm.xlu0 %187, %v184
    %v189 = vpop.permute.xlu0 %188
    %v191 = vmul.f32 %v189, %v41
    %v192 = vadd.f32 %v191, 0.0
    %v194 = vrot.slane %v191, 1
    %v196 = vadd.f32 %v192, %v194
    %v197 = vrot.slane %v191, 2
    %v199 = vadd.f32 %v196, %v197
    %v201 = vsel %vm65, %v141, 0
    %203 = vmatprep.subr.mxu0 0.0
    %204 = vmatpush1.msra.mxu0 %v37
    %205 = vmatprep.subr.mxu0 0.0
    %206 = vmatpush1.msra.mxu0 %v38
    %207 = vmatprep.subr.mxu0 0.0
    %208 = vmatpush1.msra.mxu0 %v39
    %209 = vmatprep.subr.mxu0 0.0
    %210 = vmatpush1.msra.mxu0 %v40
    %211 = vmatprep.subr.mxu0 0.0
    %212 = vmatpush1.msra.mxu0 0.0
    %213 = vmatprep.subr.mxu0 0.0
    %214 = vmatpush1.msra.mxu0 0.0
    %215 = vmatprep.subr.mxu0 0.0
    %216 = vmatpush1.msra.mxu0 0.0
    %217 = vmatprep.subr.mxu0 0.0
    %218 = vmatpush1.msra.mxu0 0.0
    %219 = vmatprep.subr.mxu0 0.0
    %220 = vmatpush1.msra.mxu0 0.0
    %221 = vmatprep.subr.mxu0 0.0
    %222 = vmatpush1.msra.mxu0 0.0
    %223 = vmatprep.subr.mxu0 0.0
    %224 = vmatpush1.msra.mxu0 0.0
    %225 = vmatprep.subr.mxu0 0.0
    %226 = vmatpush1.msra.mxu0 0.0
    %227 = vmatprep.subr.mxu0 0.0
    %228 = vmatpush1.msra.mxu0 0.0
    %229 = vmatprep.subr.mxu0 0.0
    %230 = vmatpush1.msra.mxu0 0.0
    %231 = vmatprep.subr.mxu0 0.0
    %232 = vmatpush1.msra.mxu0 0.0
    %233 = vmatprep.subr.mxu0 0.0
    %234 = vmatpush1.msra.mxu0 0.0
    %235 = vmatprep.subr.mxu0 0.0
    %236 = vmatpush1.msra.mxu0 0.0
    %237 = vmatprep.subr.mxu0 0.0
    %238 = vmatpush1.msra.mxu0 0.0
    %239 = vmatprep.subr.mxu0 0.0
    %240 = vmatpush1.msra.mxu0 0.0
    %241 = vmatprep.subr.mxu0 0.0
    %242 = vmatpush1.msra.mxu0 0.0
    %243 = vmatprep.subr.mxu0 0.0
    %244 = vmatpush1.msra.mxu0 0.0
    %245 = vmatprep.subr.mxu0 0.0
    %246 = vmatpush1.msra.mxu0 0.0
    %247 = vmatprep.subr.mxu0 0.0
    %248 = vmatpush1.msra.mxu0 0.0
    %249 = vmatprep.subr.mxu0 0.0
    %250 = vmatpush1.msra.mxu0 0.0
    %251 = vmatprep.subr.mxu0 0.0
    %252 = vmatpush1.msra.mxu0 0.0
    %253 = vmatprep.subr.mxu0 0.0
    %254 = vmatpush1.msra.mxu0 0.0
    %255 = vmatprep.subr.mxu0 0.0
    %256 = vmatpush1.msra.mxu0 0.0
    %257 = vmatprep.subr.mxu0 0.0
    %258 = vmatpush1.msra.mxu0 0.0
    %259 = vmatprep.subr.mxu0 0.0
    %260 = vmatpush1.msra.mxu0 0.0
    %261 = vmatprep.subr.mxu0 0.0
    %262 = vmatpush1.msra.mxu0 0.0
    %263 = vmatprep.subr.mxu0 0.0
    %264 = vmatpush1.msra.mxu0 0.0
    %265 = vmatprep.subr.mxu0 0.0
    %266 = vmatpush1.msra.mxu0 0.0
    %267 = vmatprep.mubr.f32.mxu0 0.0
    %268 = vmatmul.mubr.f32.gmra.mrb[0].mxu0 %v201
    %v269 = vpop.f32.mrb[0].mxu0
    %v270 = vadd.f32 0.0, %v269
    %v271 = vpop.f32.mrb[0].mxu0
    %272 = vdwg.mxu0
    %v273 = vadd.f32 %v185, %v270
    %v274 = vadd.f32 %v273, %v199
    %v275 = vtanh.pop %v274
    %276 = vst.msk [vmem:[#allocation2 + $0x1] sm:$0x1] %vm142, %v275
    %v277 = vlaneseq
    %v278 = vshrl.u32 %v277, 7
    %v279 = vsub.s32 0, %v278
    %v280 = vrot.slane %v275, %v279
    %v281 = vmul.f32 %v280, %v42
    %v282 = vsel %vm65, %v281, 0.0
    %283 = vadd.xlane.f32.xlu0 %v282
    %v284 = vpop.xlane.xlu0 %283
    %v285 = vadd.f32 %v284, %v43
    %v286 = vxor.u32 %v285, 2147483648
    %v287 = vmul.f32 %v286, 1.442695
    %v288 = vpow.pop %v287
    %v289 = vadd.f32 %v288, 1.0
    %v290 = vrcp.pop %v289
    %v291 = vmul.f32 1.0, %v290
    %292 = vrot.lane.b32.xlu0 %v184, 1
    %v293 = vpop.permute.xlu0 %292
    %295 = vset.pattern.permute.xlu0 0
    %296 = vperm.xlu0 %295, %v291
    %v297 = vpop.permute.xlu0 %296
    %v300 = vrot.slane %v293, 7
    %v302 = vsel %vm46, %v297, %v300
    %303 = vrot.lane.b32.xlu0 %v184, 127
    %v304 = vpop.permute.xlu0 %303
    %v306 = vrot.slane %v304, 7
    %v308 = vsub.f32 %v302, %v306
    %s309 = vtos %v291
    %v310 = vstv %s309
    %v312 = vmul.f32 %v310, %v308
    %v314 = vrot.slane %v312, 1
    %v316 = vadd.f32 %v304, %v314
    %v317 = vsel %vm47, %v316, 0.0
    %v318 = vld [vmem:[%s0 + $0x2] sm:$0x1]
    %320 = vset.pattern.permute.xlu0 0
    %321 = vperm.xlu0 %320, %v317
    %v322 = vpop.permute.xlu0 %321
    %v324 = vmul.f32 %v322, %v41
    %v325 = vadd.f32 %v324, 0.0
    %v327 = vrot.slane %v324, 1
    %v329 = vadd.f32 %v325, %v327
    %v330 = vrot.slane %v324, 2
    %v332 = vadd.f32 %v329, %v330
    %v334 = vsel %vm65, %v275, 0
    %336 = vmatprep.subr.mxu0 0.0
    %337 = vmatpush1.msra.mxu0 %v37
    %338 = vmatprep.subr.mxu0 0.0
    %339 = vmatpush1.msra.mxu0 %v38
    %340 = vmatprep.subr.mxu0 0.0
    %341 = vmatpush1.msra.mxu0 %v39
    %342 = vmatprep.subr.mxu0 0.0
    %343 = vmatpush1.msra.mxu0 %v40
    %344 = vmatprep.subr.mxu0 0.0
    %345 = vmatpush1.msra.mxu0 0.0
    %346 = vmatprep.subr.mxu0 0.0
    %347 = vmatpush1.msra.mxu0 0.0
    %348 = vmatprep.subr.mxu0 0.0
    %349 = vmatpush1.msra.mxu0 0.0
    %350 = vmatprep.subr.mxu0 0.0
    %351 = vmatpush1.msra.mxu0 0.0
    %352 = vmatprep.subr.mxu0 0.0
    %353 = vmatpush1.msra.mxu0 0.0
    %354 = vmatprep.subr.mxu0 0.0
    %355 = vmatpush1.msra.mxu0 0.0
    %356 = vmatprep.subr.mxu0 0.0
    %357 = vmatpush1.msra.mxu0 0.0
    %358 = vmatprep.subr.mxu0 0.0
    %359 = vmatpush1.msra.mxu0 0.0
    %360 = vmatprep.subr.mxu0 0.0
    %361 = vmatpush1.msra.mxu0 0.0
    %362 = vmatprep.subr.mxu0 0.0
    %363 = vmatpush1.msra.mxu0 0.0
    %364 = vmatprep.subr.mxu0 0.0
    %365 = vmatpush1.msra.mxu0 0.0
    %366 = vmatprep.subr.mxu0 0.0
    %367 = vmatpush1.msra.mxu0 0.0
    %368 = vmatprep.subr.mxu0 0.0
    %369 = vmatpush1.msra.mxu0 0.0
    %370 = vmatprep.subr.mxu0 0.0
    %371 = vmatpush1.msra.mxu0 0.0
    %372 = vmatprep.subr.mxu0 0.0
    %373 = vmatpush1.msra.mxu0 0.0
    %374 = vmatprep.subr.mxu0 0.0
    %375 = vmatpush1.msra.mxu0 0.0
    %376 = vmatprep.subr.mxu0 0.0
    %377 = vmatpush1.msra.mxu0 0.0
    %378 = vmatprep.subr.mxu0 0.0
    %379 = vmatpush1.msra.mxu0 0.0
    %380 = vmatprep.subr.mxu0 0.0
    %381 = vmatpush1.msra.mxu0 0.0
    %382 = vmatprep.subr.mxu0 0.0
    %383 = vmatpush1.msra.mxu0 0.0
    %384 = vmatprep.subr.mxu0 0.0
    %385 = vmatpush1.msra.mxu0 0.0
    %386 = vmatprep.subr.mxu0 0.0
    %387 = vmatpush1.msra.mxu0 0.0
    %388 = vmatprep.subr.mxu0 0.0
    %389 = vmatpush1.msra.mxu0 0.0
    %390 = vmatprep.subr.mxu0 0.0
    %391 = vmatpush1.msra.mxu0 0.0
    %392 = vmatprep.subr.mxu0 0.0
    %393 = vmatpush1.msra.mxu0 0.0
    %394 = vmatprep.subr.mxu0 0.0
    %395 = vmatpush1.msra.mxu0 0.0
    %396 = vmatprep.subr.mxu0 0.0
    %397 = vmatpush1.msra.mxu0 0.0
    %398 = vmatprep.subr.mxu0 0.0
    %399 = vmatpush1.msra.mxu0 0.0
    %400 = vmatprep.mubr.f32.mxu0 0.0
    %401 = vmatmul.mubr.f32.gmra.mrb[0].mxu0 %v334
    %v402 = vpop.f32.mrb[0].mxu0
    %v403 = vadd.f32 0.0, %v402
    %v404 = vpop.f32.mrb[0].mxu0
    %405 = vdwg.mxu0
    %v406 = vadd.f32 %v318, %v403
    %v407 = vadd.f32 %v406, %v332
    %v408 = vtanh.pop %v407
    %409 = vst.msk [vmem:[#allocation2 + $0x2] sm:$0x1] %vm142, %v408
    %v410 = vlaneseq
    %v411 = vshrl.u32 %v410, 7
    %v412 = vsub.s32 0, %v411
    %v413 = vrot.slane %v408, %v412
    %v414 = vmul.f32 %v413, %v42
    %v415 = vsel %vm65, %v414, 0.0
    %416 = vadd.xlane.f32.xlu0 %v415
    %v417 = vpop.xlane.xlu0 %416
    %v418 = vadd.f32 %v417, %v43
    %v419 = vxor.u32 %v418, 2147483648
    %v420 = vmul.f32 %v419, 1.442695
    %v421 = vpow.pop %v420
    %v422 = vadd.f32 %v421, 1.0
    %v423 = vrcp.pop %v422
    %v424 = vmul.f32 1.0, %v423
    %425 = vrot.lane.b32.xlu0 %v317, 1
    %v426 = vpop.permute.xlu0 %425
    %428 = vset.pattern.permute.xlu0 0
    %429 = vperm.xlu0 %428, %v424
    %v430 = vpop.permute.xlu0 %429
    %v433 = vrot.slane %v426, 7
    %v435 = vsel %vm46, %v430, %v433
    %436 = vrot.lane.b32.xlu0 %v317, 127
    %v437 = vpop.permute.xlu0 %436
    %v439 = vrot.slane %v437, 7
    %v441 = vsub.f32 %v435, %v439
    %s442 = vtos %v424
    %v443 = vstv %s442
    %v445 = vmul.f32 %v443, %v441
    %v447 = vrot.slane %v445, 1
    %v449 = vadd.f32 %v437, %v447
    %v450 = vsel %vm47, %v449, 0.0
    %v451 = vld [vmem:[%s0 + $0x3] sm:$0x1]
    %453 = vset.pattern.permute.xlu0 0
    %454 = vperm.xlu0 %453, %v450
    %v455 = vpop.permute.xlu0 %454
    %v457 = vmul.f32 %v455, %v41
    %v458 = vadd.f32 %v457, 0.0
    %v460 = vrot.slane %v457, 1
    %v462 = vadd.f32 %v458, %v460
    %v463 = vrot.slane %v457, 2
    %v465 = vadd.f32 %v462, %v463
    %v467 = vsel %vm65, %v408, 0
    %469 = vmatprep.subr.mxu0 0.0
    %470 = vmatpush1.msra.mxu0 %v37
    %471 = vmatprep.subr.mxu0 0.0
    %472 = vmatpush1.msra.mxu0 %v38
    %473 = vmatprep.subr.mxu0 0.0
    %474 = vmatpush1.msra.mxu0 %v39
    %475 = vmatprep.subr.mxu0 0.0
    %476 = vmatpush1.msra.mxu0 %v40
    %477 = vmatprep.subr.mxu0 0.0
    %478 = vmatpush1.msra.mxu0 0.0
    %479 = vmatprep.subr.mxu0 0.0
    %480 = vmatpush1.msra.mxu0 0.0
    %481 = vmatprep.subr.mxu0 0.0
    %482 = vmatpush1.msra.mxu0 0.0
    %483 = vmatprep.subr.mxu0 0.0
    %484 = vmatpush1.msra.mxu0 0.0
    %485 = vmatprep.subr.mxu0 0.0
    %486 = vmatpush1.msra.mxu0 0.0
    %487 = vmatprep.subr.mxu0 0.0
    %488 = vmatpush1.msra.mxu0 0.0
    %489 = vmatprep.subr.mxu0 0.0
    %490 = vmatpush1.msra.mxu0 0.0
    %491 = vmatprep.subr.mxu0 0.0
    %492 = vmatpush1.msra.mxu0 0.0
    %493 = vmatprep.subr.mxu0 0.0
    %494 = vmatpush1.msra.mxu0 0.0
    %495 = vmatprep.subr.mxu0 0.0
    %496 = vmatpush1.msra.mxu0 0.0
    %497 = vmatprep.subr.mxu0 0.0
    %498 = vmatpush1.msra.mxu0 0.0
    %499 = vmatprep.subr.mxu0 0.0
    %500 = vmatpush1.msra.mxu0 0.0
    %501 = vmatprep.subr.mxu0 0.0
    %502 = vmatpush1.msra.mxu0 0.0
    %503 = vmatprep.subr.mxu0 0.0
    %504 = vmatpush1.msra.mxu0 0.0
    %505 = vmatprep.subr.mxu0 0.0
    %506 = vmatpush1.msra.mxu0 0.0
    %507 = vmatprep.subr.mxu0 0.0
    %508 = vmatpush1.msra.mxu0 0.0
    %509 = vmatprep.subr.mxu0 0.0
    %510 = vmatpush1.msra.mxu0 0.0
    %511 = vmatprep.subr.mxu0 0.0
    %512 = vmatpush1.msra.mxu0 0.0
    %513 = vmatprep.subr.mxu0 0.0
    %514 = vmatpush1.msra.mxu0 0.0
    %515 = vmatprep.subr.mxu0 0.0
    %516 = vmatpush1.msra.mxu0 0.0
    %517 = vmatprep.subr.mxu0 0.0
    %518 = vmatpush1.msra.mxu0 0.0
    %519 = vmatprep.subr.mxu0 0.0
    %520 = vmatpush1.msra.mxu0 0.0
    %521 = vmatprep.subr.mxu0 0.0
    %522 = vmatpush1.msra.mxu0 0.0
    %523 = vmatprep.subr.mxu0 0.0
    %524 = vmatpush1.msra.mxu0 0.0
    %525 = vmatprep.subr.mxu0 0.0
    %526 = vmatpush1.msra.mxu0 0.0
    %527 = vmatprep.subr.mxu0 0.0
    %528 = vmatpush1.msra.mxu0 0.0
    %529 = vmatprep.subr.mxu0 0.0
    %530 = vmatpush1.msra.mxu0 0.0
    %531 = vmatprep.subr.mxu0 0.0
    %532 = vmatpush1.msra.mxu0 0.0
    %533 = vmatprep.mubr.f32.mxu0 0.0
    %534 = vmatmul.mubr.f32.gmra.mrb[0].mxu0 %v467
    %v535 = vpop.f32.mrb[0].mxu0
    %v536 = vadd.f32 0.0, %v535
    %v537 = vpop.f32.mrb[0].mxu0
    %538 = vdwg.mxu0
    %v539 = vadd.f32 %v451, %v536
    %v540 = vadd.f32 %v539, %v465
    %v541 = vtanh.pop %v540
    %542 = vst.msk [vmem:[#allocation2 + $0x3] sm:$0x1] %vm142, %v541
    %v543 = vlaneseq
    %v544 = vshrl.u32 %v543, 7
    %v545 = vsub.s32 0, %v544
    %v546 = vrot.slane %v541, %v545
    %v547 = vmul.f32 %v546, %v42
    %v548 = vsel %vm65, %v547, 0.0
    %549 = vadd.xlane.f32.xlu0 %v548
    %v550 = vpop.xlane.xlu0 %549
    %v551 = vadd.f32 %v550, %v43
    %v552 = vxor.u32 %v551, 2147483648
    %v553 = vmul.f32 %v552, 1.442695
    %v554 = vpow.pop %v553
    %v555 = vadd.f32 %v554, 1.0
    %v556 = vrcp.pop %v555
    %v557 = vmul.f32 1.0, %v556
    %558 = vrot.lane.b32.xlu0 %v450, 1
    %v559 = vpop.permute.xlu0 %558
    %561 = vset.pattern.permute.xlu0 0
    %562 = vperm.xlu0 %561, %v557
    %v563 = vpop.permute.xlu0 %562
    %v566 = vrot.slane %v559, 7
    %v568 = vsel %vm46, %v563, %v566
    %569 = vrot.lane.b32.xlu0 %v450, 127
    %v570 = vpop.permute.xlu0 %569
    %v572 = vrot.slane %v570, 7
    %v574 = vsub.f32 %v568, %v572
    %s575 = vtos %v557
    %v576 = vstv %s575
    %v578 = vmul.f32 %v576, %v574
    %v580 = vrot.slane %v578, 1
    %v582 = vadd.f32 %v570, %v580
    %v583 = vsel %vm47, %v582, 0.0
    %v584 = vld [vmem:[%s0 + $0x4] sm:$0x1]
    %586 = vset.pattern.permute.xlu0 0
    %587 = vperm.xlu0 %586, %v583
    %v588 = vpop.permute.xlu0 %587
    %v590 = vmul.f32 %v588, %v41
    %v591 = vadd.f32 %v590, 0.0
    %v593 = vrot.slane %v590, 1
    %v595 = vadd.f32 %v591, %v593
    %v596 = vrot.slane %v590, 2
    %v598 = vadd.f32 %v595, %v596
    %v600 = vsel %vm65, %v541, 0
    %602 = vmatprep.subr.mxu0 0.0
    %603 = vmatpush1.msra.mxu0 %v37
    %604 = vmatprep.subr.mxu0 0.0
    %605 = vmatpush1.msra.mxu0 %v38
    %606 = vmatprep.subr.mxu0 0.0
    %607 = vmatpush1.msra.mxu0 %v39
    %608 = vmatprep.subr.mxu0 0.0
    %609 = vmatpush1.msra.mxu0 %v40
    %610 = vmatprep.subr.mxu0 0.0
    %611 = vmatpush1.msra.mxu0 0.0
    %612 = vmatprep.subr.mxu0 0.0
    %613 = vmatpush1.msra.mxu0 0.0
    %614 = vmatprep.subr.mxu0 0.0
    %615 = vmatpush1.msra.mxu0 0.0
    %616 = vmatprep.subr.mxu0 0.0
    %617 = vmatpush1.msra.mxu0 0.0
    %618 = vmatprep.subr.mxu0 0.0
    %619 = vmatpush1.msra.mxu0 0.0
    %620 = vmatprep.subr.mxu0 0.0
    %621 = vmatpush1.msra.mxu0 0.0
    %622 = vmatprep.subr.mxu0 0.0
    %623 = vmatpush1.msra.mxu0 0.0
    %624 = vmatprep.subr.mxu0 0.0
    %625 = vmatpush1.msra.mxu0 0.0
    %626 = vmatprep.subr.mxu0 0.0
    %627 = vmatpush1.msra.mxu0 0.0
    %628 = vmatprep.subr.mxu0 0.0
    %629 = vmatpush1.msra.mxu0 0.0
    %630 = vmatprep.subr.mxu0 0.0
    %631 = vmatpush1.msra.mxu0 0.0
    %632 = vmatprep.subr.mxu0 0.0
    %633 = vmatpush1.msra.mxu0 0.0
    %634 = vmatprep.subr.mxu0 0.0
    %635 = vmatpush1.msra.mxu0 0.0
    %636 = vmatprep.subr.mxu0 0.0
    %637 = vmatpush1.msra.mxu0 0.0
    %638 = vmatprep.subr.mxu0 0.0
    %639 = vmatpush1.msra.mxu0 0.0
    %640 = vmatprep.subr.mxu0 0.0
    %641 = vmatpush1.msra.mxu0 0.0
    %642 = vmatprep.subr.mxu0 0.0
    %643 = vmatpush1.msra.mxu0 0.0
    %644 = vmatprep.subr.mxu0 0.0
    %645 = vmatpush1.msra.mxu0 0.0
    %646 = vmatprep.subr.mxu0 0.0
    %647 = vmatpush1.msra.mxu0 0.0
    %648 = vmatprep.subr.mxu0 0.0
    %649 = vmatpush1.msra.mxu0 0.0
    %650 = vmatprep.subr.mxu0 0.0
    %651 = vmatpush1.msra.mxu0 0.0
    %652 = vmatprep.subr.mxu0 0.0
    %653 = vmatpush1.msra.mxu0 0.0
    %654 = vmatprep.subr.mxu0 0.0
    %655 = vmatpush1.msra.mxu0 0.0
    %656 = vmatprep.subr.mxu0 0.0
    %657 = vmatpush1.msra.mxu0 0.0
    %658 = vmatprep.subr.mxu0 0.0
    %659 = vmatpush1.msra.mxu0 0.0
    %660 = vmatprep.subr.mxu0 0.0
    %661 = vmatpush1.msra.mxu0 0.0
    %662 = vmatprep.subr.mxu0 0.0
    %663 = vmatpush1.msra.mxu0 0.0
    %664 = vmatprep.subr.mxu0 0.0
    %665 = vmatpush1.msra.mxu0 0.0
    %666 = vmatprep.mubr.f32.mxu0 0.0
    %667 = vmatmul.mubr.f32.gmra.mrb[0].mxu0 %v600
    %v668 = vpop.f32.mrb[0].mxu0
    %v669 = vadd.f32 0.0, %v668
    %v670 = vpop.f32.mrb[0].mxu0
    %671 = vdwg.mxu0
    %v672 = vadd.f32 %v584, %v669
    %v673 = vadd.f32 %v672, %v598
    %v674 = vtanh.pop %v673
    %675 = vst.msk [vmem:[#allocation2 + $0x4] sm:$0x1] %vm142, %v674
    %v676 = vlaneseq
    %v677 = vshrl.u32 %v676, 7
    %v678 = vsub.s32 0, %v677
    %v679 = vrot.slane %v674, %v678
    %v680 = vmul.f32 %v679, %v42
    %v681 = vsel %vm65, %v680, 0.0
    %682 = vadd.xlane.f32.xlu0 %v681
    %v683 = vpop.xlane.xlu0 %682
    %v684 = vadd.f32 %v683, %v43
    %v685 = vxor.u32 %v684, 2147483648
    %v686 = vmul.f32 %v685, 1.442695
    %v687 = vpow.pop %v686
    %v688 = vadd.f32 %v687, 1.0
    %v689 = vrcp.pop %v688
    %v690 = vmul.f32 1.0, %v689
    %691 = vrot.lane.b32.xlu0 %v583, 1
    %v692 = vpop.permute.xlu0 %691
    %694 = vset.pattern.permute.xlu0 0
    %695 = vperm.xlu0 %694, %v690
    %v696 = vpop.permute.xlu0 %695
    %v699 = vrot.slane %v692, 7
    %v701 = vsel %vm46, %v696, %v699
    %702 = vrot.lane.b32.xlu0 %v583, 127
    %v703 = vpop.permute.xlu0 %702
    %v705 = vrot.slane %v703, 7
    %v707 = vsub.f32 %v701, %v705
    %s708 = vtos %v690
    %v709 = vstv %s708
    %v711 = vmul.f32 %v709, %v707
    %v713 = vrot.slane %v711, 1
    %v715 = vadd.f32 %v703, %v713
    %v716 = vsel %vm47, %v715, 0.0
    %v717 = vld [vmem:[%s0 + $0x5] sm:$0x1]
    %719 = vset.pattern.permute.xlu0 0
    %720 = vperm.xlu0 %719, %v716
    %v721 = vpop.permute.xlu0 %720
    %v723 = vmul.f32 %v721, %v41
    %v724 = vadd.f32 %v723, 0.0
    %v726 = vrot.slane %v723, 1
    %v728 = vadd.f32 %v724, %v726
    %v729 = vrot.slane %v723, 2
    %v731 = vadd.f32 %v728, %v729
    %v733 = vsel %vm65, %v674, 0
    %735 = vmatprep.subr.mxu0 0.0
    %736 = vmatpush1.msra.mxu0 %v37
    %737 = vmatprep.subr.mxu0 0.0
    %738 = vmatpush1.msra.mxu0 %v38
    %739 = vmatprep.subr.mxu0 0.0
    %740 = vmatpush1.msra.mxu0 %v39
    %741 = vmatprep.subr.mxu0 0.0
    %742 = vmatpush1.msra.mxu0 %v40
    %743 = vmatprep.subr.mxu0 0.0
    %744 = vmatpush1.msra.mxu0 0.0
    %745 = vmatprep.subr.mxu0 0.0
    %746 = vmatpush1.msra.mxu0 0.0
    %747 = vmatprep.subr.mxu0 0.0
    %748 = vmatpush1.msra.mxu0 0.0
    %749 = vmatprep.subr.mxu0 0.0
    %750 = vmatpush1.msra.mxu0 0.0
    %751 = vmatprep.subr.mxu0 0.0
    %752 = vmatpush1.msra.mxu0 0.0
    %753 = vmatprep.subr.mxu0 0.0
    %754 = vmatpush1.msra.mxu0 0.0
    %755 = vmatprep.subr.mxu0 0.0
    %756 = vmatpush1.msra.mxu0 0.0
    %757 = vmatprep.subr.mxu0 0.0
    %758 = vmatpush1.msra.mxu0 0.0
    %759 = vmatprep.subr.mxu0 0.0
    %760 = vmatpush1.msra.mxu0 0.0
    %761 = vmatprep.subr.mxu0 0.0
    %762 = vmatpush1.msra.mxu0 0.0
    %763 = vmatprep.subr.mxu0 0.0
    %764 = vmatpush1.msra.mxu0 0.0
    %765 = vmatprep.subr.mxu0 0.0
    %766 = vmatpush1.msra.mxu0 0.0
    %767 = vmatprep.subr.mxu0 0.0
    %768 = vmatpush1.msra.mxu0 0.0
    %769 = vmatprep.subr.mxu0 0.0
    %770 = vmatpush1.msra.mxu0 0.0
    %771 = vmatprep.subr.mxu0 0.0
    %772 = vmatpush1.msra.mxu0 0.0
    %773 = vmatprep.subr.mxu0 0.0
    %774 = vmatpush1.msra.mxu0 0.0
    %775 = vmatprep.subr.mxu0 0.0
    %776 = vmatpush1.msra.mxu0 0.0
    %777 = vmatprep.subr.mxu0 0.0
    %778 = vmatpush1.msra.mxu0 0.0
    %779 = vmatprep.subr.mxu0 0.0
    %780 = vmatpush1.msra.mxu0 0.0
    %781 = vmatprep.subr.mxu0 0.0
    %782 = vmatpush1.msra.mxu0 0.0
    %783 = vmatprep.subr.mxu0 0.0
    %784 = vmatpush1.msra.mxu0 0.0
    %785 = vmatprep.subr.mxu0 0.0
    %786 = vmatpush1.msra.mxu0 0.0
    %787 = vmatprep.subr.mxu0 0.0
    %788 = vmatpush1.msra.mxu0 0.0
    %789 = vmatprep.subr.mxu0 0.0
    %790 = vmatpush1.msra.mxu0 0.0
    %791 = vmatprep.subr.mxu0 0.0
    %792 = vmatpush1.msra.mxu0 0.0
    %793 = vmatprep.subr.mxu0 0.0
    %794 = vmatpush1.msra.mxu0 0.0
    %795 = vmatprep.subr.mxu0 0.0
    %796 = vmatpush1.msra.mxu0 0.0
    %797 = vmatprep.subr.mxu0 0.0
    %798 = vmatpush1.msra.mxu0 0.0
    %799 = vmatprep.mubr.f32.mxu0 0.0
    %800 = vmatmul.mubr.f32.gmra.mrb[0].mxu0 %v733
    %v801 = vpop.f32.mrb[0].mxu0
    %v802 = vadd.f32 0.0, %v801
    %v803 = vpop.f32.mrb[0].mxu0
    %804 = vdwg.mxu0
    %v805 = vadd.f32 %v717, %v802
    %v806 = vadd.f32 %v805, %v731
    %v807 = vtanh.pop %v806
    %808 = vst.msk [vmem:[#allocation2 + $0x5] sm:$0x1] %vm142, %v807
    %v809 = vlaneseq
    %v810 = vshrl.u32 %v809, 7
    %v811 = vsub.s32 0, %v810
    %v812 = vrot.slane %v807, %v811
    %v813 = vmul.f32 %v812, %v42
    %v814 = vsel %vm65, %v813, 0.0
    %815 = vadd.xlane.f32.xlu0 %v814
    %v816 = vpop.xlane.xlu0 %815
    %v817 = vadd.f32 %v816, %v43
    %v818 = vxor.u32 %v817, 2147483648
    %v819 = vmul.f32 %v818, 1.442695
    %v820 = vpow.pop %v819
    %v821 = vadd.f32 %v820, 1.0
    %v822 = vrcp.pop %v821
    %v823 = vmul.f32 1.0, %v822
    %824 = vrot.lane.b32.xlu0 %v716, 1
    %v825 = vpop.permute.xlu0 %824
    %827 = vset.pattern.permute.xlu0 0
    %828 = vperm.xlu0 %827, %v823
    %v829 = vpop.permute.xlu0 %828
    %v832 = vrot.slane %v825, 7
    %v834 = vsel %vm46, %v829, %v832
    %835 = vrot.lane.b32.xlu0 %v716, 127
    %v836 = vpop.permute.xlu0 %835
    %v838 = vrot.slane %v836, 7
    %v840 = vsub.f32 %v834, %v838
    %s841 = vtos %v823
    %v842 = vstv %s841
    %v844 = vmul.f32 %v842, %v840
    %v846 = vrot.slane %v844, 1
    %v848 = vadd.f32 %v836, %v846
    %v849 = vsel %vm47, %v848, 0.0
    %v850 = vld [vmem:[%s0 + $0x6] sm:$0x1]
    %852 = vset.pattern.permute.xlu0 0
    %853 = vperm.xlu0 %852, %v849
    %v854 = vpop.permute.xlu0 %853
    %v856 = vmul.f32 %v854, %v41
    %v857 = vadd.f32 %v856, 0.0
    %v859 = vrot.slane %v856, 1
    %v861 = vadd.f32 %v857, %v859
    %v862 = vrot.slane %v856, 2
    %v864 = vadd.f32 %v861, %v862
    %v866 = vsel %vm65, %v807, 0
    %868 = vmatprep.subr.mxu0 0.0
    %869 = vmatpush1.msra.mxu0 %v37
    %870 = vmatprep.subr.mxu0 0.0
    %871 = vmatpush1.msra.mxu0 %v38
    %872 = vmatprep.subr.mxu0 0.0
    %873 = vmatpush1.msra.mxu0 %v39
    %874 = vmatprep.subr.mxu0 0.0
    %875 = vmatpush1.msra.mxu0 %v40
    %876 = vmatprep.subr.mxu0 0.0
    %877 = vmatpush1.msra.mxu0 0.0
    %878 = vmatprep.subr.mxu0 0.0
    %879 = vmatpush1.msra.mxu0 0.0
    %880 = vmatprep.subr.mxu0 0.0
    %881 = vmatpush1.msra.mxu0 0.0
    %882 = vmatprep.subr.mxu0 0.0
    %883 = vmatpush1.msra.mxu0 0.0
    %884 = vmatprep.subr.mxu0 0.0
    %885 = vmatpush1.msra.mxu0 0.0
    %886 = vmatprep.subr.mxu0 0.0
    %887 = vmatpush1.msra.mxu0 0.0
    %888 = vmatprep.subr.mxu0 0.0
    %889 = vmatpush1.msra.mxu0 0.0
    %890 = vmatprep.subr.mxu0 0.0
    %891 = vmatpush1.msra.mxu0 0.0
    %892 = vmatprep.subr.mxu0 0.0
    %893 = vmatpush1.msra.mxu0 0.0
    %894 = vmatprep.subr.mxu0 0.0
    %895 = vmatpush1.msra.mxu0 0.0
    %896 = vmatprep.subr.mxu0 0.0
    %897 = vmatpush1.msra.mxu0 0.0
    %898 = vmatprep.subr.mxu0 0.0
    %899 = vmatpush1.msra.mxu0 0.0
    %900 = vmatprep.subr.mxu0 0.0
    %901 = vmatpush1.msra.mxu0 0.0
    %902 = vmatprep.subr.mxu0 0.0
    %903 = vmatpush1.msra.mxu0 0.0
    %904 = vmatprep.subr.mxu0 0.0
    %905 = vmatpush1.msra.mxu0 0.0
    %906 = vmatprep.subr.mxu0 0.0
    %907 = vmatpush1.msra.mxu0 0.0
    %908 = vmatprep.subr.mxu0 0.0
    %909 = vmatpush1.msra.mxu0 0.0
    %910 = vmatprep.subr.mxu0 0.0
    %911 = vmatpush1.msra.mxu0 0.0
    %912 = vmatprep.subr.mxu0 0.0
    %913 = vmatpush1.msra.mxu0 0.0
    %914 = vmatprep.subr.mxu0 0.0
    %915 = vmatpush1.msra.mxu0 0.0
    %916 = vmatprep.subr.mxu0 0.0
    %917 = vmatpush1.msra.mxu0 0.0
    %918 = vmatprep.subr.mxu0 0.0
    %919 = vmatpush1.msra.mxu0 0.0
    %920 = vmatprep.subr.mxu0 0.0
    %921 = vmatpush1.msra.mxu0 0.0
    %922 = vmatprep.subr.mxu0 0.0
    %923 = vmatpush1.msra.mxu0 0.0
    %924 = vmatprep.subr.mxu0 0.0
    %925 = vmatpush1.msra.mxu0 0.0
    %926 = vmatprep.subr.mxu0 0.0
    %927 = vmatpush1.msra.mxu0 0.0
    %928 = vmatprep.subr.mxu0 0.0
    %929 = vmatpush1.msra.mxu0 0.0
    %930 = vmatprep.subr.mxu0 0.0
    %931 = vmatpush1.msra.mxu0 0.0
    %932 = vmatprep.mubr.f32.mxu0 0.0
    %933 = vmatmul.mubr.f32.gmra.mrb[0].mxu0 %v866
    %v934 = vpop.f32.mrb[0].mxu0
    %v935 = vadd.f32 0.0, %v934
    %v936 = vpop.f32.mrb[0].mxu0
    %937 = vdwg.mxu0
    %v938 = vadd.f32 %v850, %v935
    %v939 = vadd.f32 %v938, %v864
    %v940 = vtanh.pop %v939
    %941 = vst.msk [vmem:[#allocation2 + $0x6] sm:$0x1] %vm142, %v940
    %v942 = vlaneseq
    %v943 = vshrl.u32 %v942, 7
    %v944 = vsub.s32 0, %v943
    %v945 = vrot.slane %v940, %v944
    %v946 = vmul.f32 %v945, %v42
    %v947 = vsel %vm65, %v946, 0.0
    %948 = vadd.xlane.f32.xlu0 %v947
    %v949 = vpop.xlane.xlu0 %948
    %v950 = vadd.f32 %v949, %v43
    %v951 = vxor.u32 %v950, 2147483648
    %v952 = vmul.f32 %v951, 1.442695
    %v953 = vpow.pop %v952
    %v954 = vadd.f32 %v953, 1.0
    %v955 = vrcp.pop %v954
    %v956 = vmul.f32 1.0, %v955
    %957 = vrot.lane.b32.xlu0 %v849, 1
    %v958 = vpop.permute.xlu0 %957
    %960 = vset.pattern.permute.xlu0 0
    %961 = vperm.xlu0 %960, %v956
    %v962 = vpop.permute.xlu0 %961
    %v965 = vrot.slane %v958, 7
    %v967 = vsel %vm46, %v962, %v965
    %968 = vrot.lane.b32.xlu0 %v849, 127
    %v969 = vpop.permute.xlu0 %968
    %v971 = vrot.slane %v969, 7
    %v973 = vsub.f32 %v967, %v971
    %s974 = vtos %v956
    %v975 = vstv %s974
    %v977 = vmul.f32 %v975, %v973
    %v979 = vrot.slane %v977, 1
    %v981 = vadd.f32 %v969, %v979
    %v982 = vsel %vm47, %v981, 0.0
    %v983 = vld [vmem:[%s0 + $0x7] sm:$0x1]
    %985 = vset.pattern.permute.xlu0 0
    %986 = vperm.xlu0 %985, %v982
    %v987 = vpop.permute.xlu0 %986
    %v989 = vmul.f32 %v987, %v41
    %v990 = vadd.f32 %v989, 0.0
    %v992 = vrot.slane %v989, 1
    %v994 = vadd.f32 %v990, %v992
    %v995 = vrot.slane %v989, 2
    %v997 = vadd.f32 %v994, %v995
    %v999 = vsel %vm65, %v940, 0
    %1001 = vmatprep.subr.mxu0 0.0
    %1002 = vmatpush1.msra.mxu0 %v37
    %1003 = vmatprep.subr.mxu0 0.0
    %1004 = vmatpush1.msra.mxu0 %v38
    %1005 = vmatprep.subr.mxu0 0.0
    %1006 = vmatpush1.msra.mxu0 %v39
    %1007 = vmatprep.subr.mxu0 0.0
    %1008 = vmatpush1.msra.mxu0 %v40
    %1009 = vmatprep.subr.mxu0 0.0
    %1010 = vmatpush1.msra.mxu0 0.0
    %1011 = vmatprep.subr.mxu0 0.0
    %1012 = vmatpush1.msra.mxu0 0.0
    %1013 = vmatprep.subr.mxu0 0.0
    %1014 = vmatpush1.msra.mxu0 0.0
    %1015 = vmatprep.subr.mxu0 0.0
    %1016 = vmatpush1.msra.mxu0 0.0
    %1017 = vmatprep.subr.mxu0 0.0
    %1018 = vmatpush1.msra.mxu0 0.0
    %1019 = vmatprep.subr.mxu0 0.0
    %1020 = vmatpush1.msra.mxu0 0.0
    %1021 = vmatprep.subr.mxu0 0.0
    %1022 = vmatpush1.msra.mxu0 0.0
    %1023 = vmatprep.subr.mxu0 0.0
    %1024 = vmatpush1.msra.mxu0 0.0
    %1025 = vmatprep.subr.mxu0 0.0
    %1026 = vmatpush1.msra.mxu0 0.0
    %1027 = vmatprep.subr.mxu0 0.0
    %1028 = vmatpush1.msra.mxu0 0.0
    %1029 = vmatprep.subr.mxu0 0.0
    %1030 = vmatpush1.msra.mxu0 0.0
    %1031 = vmatprep.subr.mxu0 0.0
    %1032 = vmatpush1.msra.mxu0 0.0
    %1033 = vmatprep.subr.mxu0 0.0
    %1034 = vmatpush1.msra.mxu0 0.0
    %1035 = vmatprep.subr.mxu0 0.0
    %1036 = vmatpush1.msra.mxu0 0.0
    %1037 = vmatprep.subr.mxu0 0.0
    %1038 = vmatpush1.msra.mxu0 0.0
    %1039 = vmatprep.subr.mxu0 0.0
    %1040 = vmatpush1.msra.mxu0 0.0
    %1041 = vmatprep.subr.mxu0 0.0
    %1042 = vmatpush1.msra.mxu0 0.0
    %1043 = vmatprep.subr.mxu0 0.0
    %1044 = vmatpush1.msra.mxu0 0.0
    %1045 = vmatprep.subr.mxu0 0.0
    %1046 = vmatpush1.msra.mxu0 0.0
    %1047 = vmatprep.subr.mxu0 0.0
    %1048 = vmatpush1.msra.mxu0 0.0
    %1049 = vmatprep.subr.mxu0 0.0
    %1050 = vmatpush1.msra.mxu0 0.0
    %1051 = vmatprep.subr.mxu0 0.0
    %1052 = vmatpush1.msra.mxu0 0.0
    %1053 = vmatprep.subr.mxu0 0.0
    %1054 = vmatpush1.msra.mxu0 0.0
    %1055 = vmatprep.subr.mxu0 0.0
    %1056 = vmatpush1.msra.mxu0 0.0
    %1057 = vmatprep.subr.mxu0 0.0
    %1058 = vmatpush1.msra.mxu0 0.0
    %1059 = vmatprep.subr.mxu0 0.0
    %1060 = vmatpush1.msra.mxu0 0.0
    %1061 = vmatprep.subr.mxu0 0.0
    %1062 = vmatpush1.msra.mxu0 0.0
    %1063 = vmatprep.subr.mxu0 0.0
    %1064 = vmatpush1.msra.mxu0 0.0
    %1065 = vmatprep.mubr.f32.mxu0 0.0
    %1066 = vmatmul.mubr.f32.gmra.mrb[0].mxu0 %v999
    %v1067 = vpop.f32.mrb[0].mxu0
    %v1068 = vadd.f32 0.0, %v1067
    %v1069 = vpop.f32.mrb[0].mxu0
    %1070 = vdwg.mxu0
    %v1071 = vadd.f32 %v983, %v1068
    %v1072 = vadd.f32 %v1071, %v997
    %v1073 = vtanh.pop %v1072
    %1074 = vst.msk [vmem:[#allocation2 + $0x7] sm:$0x1] %vm142, %v1073
    %v1075 = vlaneseq
    %v1076 = vshrl.u32 %v1075, 7
    %v1077 = vsub.s32 0, %v1076
    %v1078 = vrot.slane %v1073, %v1077
    %v1079 = vmul.f32 %v1078, %v42
    %v1080 = vsel %vm65, %v1079, 0.0
    %1081 = vadd.xlane.f32.xlu0 %v1080
    %v1082 = vpop.xlane.xlu0 %1081
    %v1083 = vadd.f32 %v1082, %v43
    %v1084 = vxor.u32 %v1083, 2147483648
    %v1085 = vmul.f32 %v1084, 1.442695
    %v1086 = vpow.pop %v1085
    %v1087 = vadd.f32 %v1086, 1.0
    %v1088 = vrcp.pop %v1087
    %v1089 = vmul.f32 1.0, %v1088
    %1090 = vrot.lane.b32.xlu0 %v982, 1
    %v1091 = vpop.permute.xlu0 %1090
    %1093 = vset.pattern.permute.xlu0 0
    %1094 = vperm.xlu0 %1093, %v1089
    %v1095 = vpop.permute.xlu0 %1094
    %v1098 = vrot.slane %v1091, 7
    %v1100 = vsel %vm46, %v1095, %v1098
    %1101 = vrot.lane.b32.xlu0 %v982, 127
    %v1102 = vpop.permute.xlu0 %1101
    %v1104 = vrot.slane %v1102, 7
    %v1106 = vsub.f32 %v1100, %v1104
    %s1107 = vtos %v1089
    %v1108 = vstv %s1107
    %v1110 = vmul.f32 %v1108, %v1106
    %v1112 = vrot.slane %v1110, 1
    %v1114 = vadd.f32 %v1102, %v1112
    %v1115 = vsel %vm47, %v1114, 0.0
    %1116 = vst.msk [vmem:[#allocation5] sm:$0x1] %vm142, %v1073
    %1117 = vst [vmem:[%s11] sm:$0x7] %v1115
    %v1118 = vld [vmem:[#allocation2] sm:$0xff]
    %v1119 = vld [vmem:[%s7] sm:$0xff]
    %v1120 = vld [vmem:[%s7 + $0x8] sm:$0xff]
    %v1121 = vld [vmem:[%s7 + $0x10] sm:$0xff]
    %v1122 = vld [vmem:[%s7 + $0x18] sm:$0xff]
    %v1123 = vld [vmem:[%s8] sm:$0x1]
    %v1125 = vlaneseq
    %v1126 = vshrl.u32 %v1125, 7
    %v1127 = vsub.s32 0, %v1126
    %v1128 = vrot.slane %v1123, %v1127
    %v1131 = vsel %vm65, %v1118, 0
    %1133 = vmatprep.subr.mxu0 0.0
    %1134 = vmatpush1.msra.mxu0 %v1119
    %1135 = vmatprep.subr.mxu0 0.0
    %1136 = vmatpush1.msra.mxu0 %v1120
    %1137 = vmatprep.subr.mxu0 0.0
    %1138 = vmatpush1.msra.mxu0 %v1121
    %1139 = vmatprep.subr.mxu0 0.0
    %1140 = vmatpush1.msra.mxu0 %v1122
    %1141 = vmatprep.subr.mxu0 0.0
    %1142 = vmatpush1.msra.mxu0 0.0
    %1143 = vmatprep.subr.mxu0 0.0
    %1144 = vmatpush1.msra.mxu0 0.0
    %1145 = vmatprep.subr.mxu0 0.0
    %1146 = vmatpush1.msra.mxu0 0.0
    %1147 = vmatprep.subr.mxu0 0.0
    %1148 = vmatpush1.msra.mxu0 0.0
    %1149 = vmatprep.subr.mxu0 0.0
    %1150 = vmatpush1.msra.mxu0 0.0
    %1151 = vmatprep.subr.mxu0 0.0
    %1152 = vmatpush1.msra.mxu0 0.0
    %1153 = vmatprep.subr.mxu0 0.0
    %1154 = vmatpush1.msra.mxu0 0.0
    %1155 = vmatprep.subr.mxu0 0.0
    %1156 = vmatpush1.msra.mxu0 0.0
    %1157 = vmatprep.subr.mxu0 0.0
    %1158 = vmatpush1.msra.mxu0 0.0
    %1159 = vmatprep.subr.mxu0 0.0
    %1160 = vmatpush1.msra.mxu0 0.0
    %1161 = vmatprep.subr.mxu0 0.0
    %1162 = vmatpush1.msra.mxu0 0.0
    %1163 = vmatprep.subr.mxu0 0.0
    %1164 = vmatpush1.msra.mxu0 0.0
    %1165 = vmatprep.subr.mxu0 0.0
    %1166 = vmatpush1.msra.mxu0 0.0
    %1167 = vmatprep.subr.mxu0 0.0
    %1168 = vmatpush1.msra.mxu0 0.0
    %1169 = vmatprep.subr.mxu0 0.0
    %1170 = vmatpush1.msra.mxu0 0.0
    %1171 = vmatprep.subr.mxu0 0.0
    %1172 = vmatpush1.msra.mxu0 0.0
    %1173 = vmatprep.subr.mxu0 0.0
    %1174 = vmatpush1.msra.mxu0 0.0
    %1175 = vmatprep.subr.mxu0 0.0
    %1176 = vmatpush1.msra.mxu0 0.0
    %1177 = vmatprep.subr.mxu0 0.0
    %1178 = vmatpush1.msra.mxu0 0.0
    %1179 = vmatprep.subr.mxu0 0.0
    %1180 = vmatpush1.msra.mxu0 0.0
    %1181 = vmatprep.subr.mxu0 0.0
    %1182 = vmatpush1.msra.mxu0 0.0
    %1183 = vmatprep.subr.mxu0 0.0
    %1184 = vmatpush1.msra.mxu0 0.0
    %1185 = vmatprep.subr.mxu0 0.0
    %1186 = vmatpush1.msra.mxu0 0.0
    %1187 = vmatprep.subr.mxu0 0.0
    %1188 = vmatpush1.msra.mxu0 0.0
    %1189 = vmatprep.subr.mxu0 0.0
    %1190 = vmatpush1.msra.mxu0 0.0
    %1191 = vmatprep.subr.mxu0 0.0
    %1192 = vmatpush1.msra.mxu0 0.0
    %1193 = vmatprep.subr.mxu0 0.0
    %1194 = vmatpush1.msra.mxu0 0.0
    %1195 = vmatprep.subr.mxu0 0.0
    %1196 = vmatpush1.msra.mxu0 0.0
    %1197 = vmatprep.mubr.f32.mxu0 0.0
    %1198 = vmatmul.mubr.f32.gmra.mrb[0].mxu0 %v1131
    %v1199 = vpop.f32.mrb[0].mxu0
    %v1200 = vadd.f32 %v1128, %v1199
    %v1201 = vpop.f32.mrb[0].mxu0
    %1202 = vdwg.mxu0
    %v1203 = vxor.u32 %v1200, 2147483648
    %v1204 = vmul.f32 %v1203, 1.442695
    %v1205 = vpow.pop %v1204
    %v1206 = vadd.f32 %v1205, 1.0
    %v1207 = vrcp.pop %v1206
    %v1208 = vmul.f32 1.0, %v1207
    %1209 = vst [vmem:[#allocation3] sm:$0xff] %v1208
    // Predicated region
    $region38: #{srnn_forward_seq.1} parent=1 // pred_check
      _
    $region39: #{srnn_forward_seq.1} parent=1 // pred_check_branch
      %1211 = sbr.rel (0) target = $region41
    $region40: #{srnn_forward_seq.1} parent=1 // pred_region
      %s1213 = ssub.s32 128, 128
      %1214 = vsyncadd [#allocation4], %s1213
      %s1216 = sshll.u32 [#allocation3], 4
      %s1217 = int_to_ptr.vmem [resolvable:$true] %s1216
      %1219 = dma.vmem_to_hbm [thread:$0]  %s1217, 128, %s9, [#allocation4]
    $region41: #{srnn_forward_seq.1} parent=1 // pred_fallthru
      _
    // Predicated region
    $region42: #{srnn_forward_seq.1} parent=1 // pred_check
      _
    $region43: #{srnn_forward_seq.1} parent=1 // pred_check_branch
      %1221 = sbr.rel (0) target = $region45
    $region44: #{srnn_forward_seq.1} parent=1 // pred_region
      %s1223 = ssub.s32 16, 16
      %1224 = vsyncadd [#allocation6], %s1223
      %s1226 = sshll.u32 [#allocation5], 4
      %s1227 = int_to_ptr.vmem [resolvable:$true] %s1226
      %1229 = dma.vmem_to_hbm [thread:$0]  %s1227, 16, %s10, [#allocation6]
    $region45: #{srnn_forward_seq.1} parent=1 // pred_fallthru
      _
    // Predicated region
    $region46: #{srnn_forward_seq.1} parent=1 // pred_check
      _
    $region47: #{srnn_forward_seq.1} parent=1 // pred_check_branch
      %1231 = sbr.rel (0) target = $region49
    $region48: #{srnn_forward_seq.1} parent=1 // pred_region
      _
    $region49: #{srnn_forward_seq.1} parent=1 // pred_fallthru
      _
    // Predicated region
    $region50: #{srnn_forward_seq.1} parent=1 // pred_check
      _
    $region51: #{srnn_forward_seq.1} parent=1 // pred_check_branch
      %1233 = sbr.rel (0) target = $region53
    $region52: #{srnn_forward_seq.1} parent=1 // pred_region
      %1234 = dma.done [#allocation4], 128
    $region53: #{srnn_forward_seq.1} parent=1 // pred_fallthru
      _
    // Predicated region
    $region54: #{srnn_forward_seq.1} parent=1 // pred_check
      _
    $region55: #{srnn_forward_seq.1} parent=1 // pred_check_branch
      %1236 = sbr.rel (0) target = $region57
    $region56: #{srnn_forward_seq.1} parent=1 // pred_region
      %1237 = dma.done [#allocation6], 16
    $region57: #{srnn_forward_seq.1} parent=1 // pred_fallthru
      _
    // Predicated region
    $region58: #{srnn_forward_seq.1} parent=1 // pred_check
      _
    $region59: #{srnn_forward_seq.1} parent=1 // pred_check_branch
      %1239 = sbr.rel (0) target = $region61
    $region60: #{srnn_forward_seq.1} parent=1 // pred_region
      _
    $region61: #{srnn_forward_seq.1} parent=1 // pred_fallthru
      _
    %1240 = vsyncpa [#allocation4], 1
    %1241 = vsyncpa [#allocation6], 1

</llo_original>
